<compile_context>
chip_gen: v7x
topology: tpu7x:2x2x1
jax: 0.10.0
libtpu: 0.0.40
codegen_flags: <defaults>
</compile_context>

<pallas_src>
import jax
import jax.numpy as jnp
import numpy as np
from jax import lax
from jax.experimental import pallas as pl
from jax.experimental.pallas import tpu as pltpu


def _round_up(x, m):
    return ((x + m - 1) // m) * m


def _vacf_kernel(a_ref, inv_ref, out_ref, ring_ref):
    # a_ref:    (tm, fk)      vel time tile i, feature chunk k (VMEM, read from HBM once)
    # inv_ref:  (1, tr_pad)   1 / ((T - t) * F), zeroed beyond t_range
    # out_ref:  (8, tr_pad)   per-lag partial sums, resident accumulator
    # ring_ref: (L, tm, fk)   ring buffer of the previous L time tiles (feature chunk k)
    k = pl.program_id(0)
    i = pl.program_id(1)
    n_k = pl.num_programs(0)
    n_i = pl.num_programs(1)
    tm = a_ref.shape[0]
    L = ring_ref.shape[0]

    @pl.when(jnp.logical_and(k == 0, i == 0))
    def _init():
        out_ref[...] = jnp.zeros_like(out_ref)

    # At the start of each feature-chunk pass there is no "previous tile": zero the ring
    # so nonexistent tiles contribute exactly 0 to the cross terms.
    @pl.when(i == 0)
    def _reset_ring():
        ring_ref[...] = jnp.zeros_like(ring_ref)

    a = a_ref[...]                                            # (tm, fk)

    # Banded Gram blocks on the MXU (feature axis contracted directly, no transposes):
    #   gs[j][r, c] = <vel[(i-j)*tm + r], vel[i*tm + c]>   restricted to chunk k.
    dims = (((1,), (1,)), ((), ()))
    gs = [lax.dot_general(a, a, dims, preferred_element_type=jnp.float32)]
    for j in range(1, L + 1):
        # Tile i-j lives in ring slot (i-j) mod L; slots not yet written this pass are
        # still zero (ring reset at i == 0), so i-j < 0 contributes exactly 0.
        slot = (i - j + L) % L                                # non-negative operands
        prev = ring_ref[slot]                                 # (tm, fk), VMEM only
        gs.append(lax.dot_general(prev, a, dims, preferred_element_type=jnp.float32))

    row = lax.broadcasted_iota(jnp.int32, (tm, 1), 0)         # narrow sublane iota
    col = lax.broadcasted_iota(jnp.int32, (1, tm), 1)
    upper = row <= col                                        # c >= r

    for l in range(L):
        # Merge the two Gram blocks feeding lag chunk l BEFORE the shear:
        #   comb[r, c] = gs[l][r, c]     if c >= r   (lag = l*tm + c - r)
        #              = gs[l+1][r, c]   if c <  r   (lag = (l+1)*tm + c - r)
        comb = jnp.where(upper, gs[l], gs[l + 1])             # (tm, tm)

        # Shear: circular left-roll row r by r, so sheared[r, u] = comb[r, (r+u) % tm].
        #   r+u <  tm -> gs[l]  [r, r+u]     : lag l*tm + u
        #   r+u >= tm -> gs[l+1][r, r+u-tm]  : lag l*tm + u   (wraparound used on purpose)
        x = comb
        s = 1
        while s < tm:
            rolled = jnp.concatenate([x[:, s:], x[:, :s]], axis=1)
            x = jnp.where((row & s) != 0, rolled, x)
            s *= 2

        contrib = jnp.sum(x, axis=0, keepdims=True)           # (1, tm) sublane reduce
        out_ref[:, l * tm:(l + 1) * tm] += contrib            # broadcast over 8 sublanes

    # Carry this tile for the next steps' cross terms (tile i -> ring slot i % L).
    ring_ref[i % L] = a

    @pl.when(jnp.logical_and(k == n_k - 1, i == n_i - 1))
    def _finalize():
        out_ref[...] = out_ref[...] * inv_ref[...]


def vacf_forward(vel, t_range, *, f_chunk=1024, tm=128):
    """vel: (T, natoms, 3) float.  Returns (t_range,) float32 matching torchmd vacf."""
    T = int(vel.shape[0])
    F = int(np.prod(vel.shape[1:]))
    if not (1 <= t_range <= T):
        raise ValueError(f"t_range must satisfy 1 <= t_range <= T; got {t_range}, T={T}")
    if tm % 128 != 0:
        raise ValueError("tm must be a multiple of 128")

    vel_flat = jnp.asarray(vel, jnp.float32).reshape(T, F)

    # Lag axis padded to a multiple of the time tile; L lag chunks handled in-kernel.
    tr_pad = _round_up(t_range, tm)
    L = tr_pad // tm

    # Tight feature chunking (no over-padding of F).
    n_k = -(-F // max(int(f_chunk), 128))
    fk = _round_up(-(-F // n_k), 128)
    Fp = n_k * fk

    n_tiles = -(-T // tm)
    T_pad = n_tiles * tm                       # no +1 guard tile needed any more

    # Zero padding is exact: padded rows/features contribute 0 to every dot product.
    vel_pad = jnp.zeros((T_pad, Fp), jnp.float32).at[:T, :F].set(vel_flat)

    # Exact reciprocal normalization 1/((T - t) * natoms * 3), zeroed past t_range.
    t_idx = np.arange(tr_pad)
    counts = np.maximum((T - t_idx) * F, 1).astype(np.float64)
    inv_np = np.where(t_idx < t_range, 1.0 / counts, 0.0).astype(np.float32)
    inv = jnp.asarray(inv_np).reshape(1, tr_pad)

    grid = (n_k, n_tiles)                      # time tiles innermost (carried ring scratch)
    a_spec = pl.BlockSpec((tm, fk), lambda k, i: (i, k))
    inv_spec = pl.BlockSpec((1, tr_pad), lambda k, i: (0, 0))
    out_spec = pl.BlockSpec((8, tr_pad), lambda k, i: (0, 0))

    out = pl.pallas_call(
        _vacf_kernel,
        out_shape=jax.ShapeDtypeStruct((8, tr_pad), jnp.float32),
        grid_spec=pltpu.PrefetchScalarGridSpec(
            num_scalar_prefetch=0,
            grid=grid,
            in_specs=[a_spec, inv_spec],
            out_specs=out_spec,
            scratch_shapes=[pltpu.VMEM((L, tm, fk), jnp.float32)],
        ),
        compiler_params=pltpu.CompilerParams(
            # Sequential reduction axes; per-step footprint is a few MiB at tm=128 and
            # fk <= 1024, so a 32 MiB scoped limit is safe on v5e/v6e/v7x alike.
            dimension_semantics=("arbitrary", "arbitrary"),
            vmem_limit_bytes=32 * 1024 * 1024,
        ),
    )(vel_pad, inv)

    # Row 0 carries the (already normalized) result; remaining sublanes are duplicates.
    return out[0, :t_range]


def vacf_reference(vel, t_range):
    """Pure-JAX reference mirroring the PyTorch module."""
    vel = jnp.asarray(vel, jnp.float32)
    vals = [(vel * vel).mean()[None]]
    for t in range(1, t_range):
        vals.append((vel[t:] * vel[:-t]).mean()[None])
    return jnp.concatenate(vals, axis=0)


if __name__ == "__main__":
    key = jax.random.PRNGKey(0)

    # Small deterministic example: single time tile, single feature chunk.
    T, N, t_range = 16, 8, 8
    vel = jax.random.normal(key, (T, N, 3), dtype=jnp.float32)
    out = jax.block_until_ready(vacf_forward(vel, t_range))
    ref = vacf_reference(vel, t_range)
    assert out.shape == (t_range,)
    assert jnp.allclose(out, ref, atol=1e-5, rtol=1e-5), (out, ref)

    # Multiple time tiles, cross-tile lags, partial time padding, tight fk=640 (F=540).
    T2, N2, t_range2 = 260, 180, 100
    vel2 = jax.random.normal(jax.random.PRNGKey(1), (T2, N2, 3), dtype=jnp.float32)
    out2 = jax.block_until_ready(vacf_forward(vel2, t_range2))
    ref2 = vacf_reference(vel2, t_range2)
    assert out2.shape == (t_range2,)
    assert jnp.allclose(out2, ref2, atol=1e-5, rtol=1e-5), (out2, ref2)

    # Two feature chunks (F=1200 -> n_k=2) and two lag chunks (t_range=200 -> L=2),
    # exercising the ring-buffer cross terms across multiple previous tiles.
    T3, N3, t_range3 = 300, 400, 200
    vel3 = jax.random.normal(jax.random.PRNGKey(2), (T3, N3, 3), dtype=jnp.float32)
    out3 = jax.block_until_ready(vacf_forward(vel3, t_range3))
    ref3 = vacf_reference(vel3, t_range3)
    assert out3.shape == (t_range3,)
    assert jnp.allclose(out3, ref3, atol=1e-5, rtol=1e-5), (out3, ref3)

    print("KERNEL_OK")
</pallas_src>

<mosaic_0001>
module attributes {stable_mosaic.version = 11 : i64} {
  func.func @_vacf_kernel(%arg0: i32, %arg1: i32, %arg2: memref<128x128xf32, #tpu.memory_space<vmem>>, %arg3: memref<1x128xf32, #tpu.memory_space<vmem>>, %arg4: memref<8x128xf32, #tpu.memory_space<vmem>>, %arg5: memref<1x128x128xf32, #tpu.memory_space<vmem>>) attributes {dimension_semantics = [#tpu.dimension_semantics<arbitrary>, #tpu.dimension_semantics<arbitrary>], iteration_bounds = array<i64: 1, 1>, scalar_prefetch = 0 : i64, scratch_operands = 1 : i64, tpu.core_type = #tpu.core_type<tc>, window_params = [{transform_indices = @transform_0, window_bounds = array<i64: 128, 128>}, {pipeline_mode = #tpu.pipeline_mode<synchronous>, transform_indices = @transform_1, window_bounds = array<i64: 1, 128>}, {pipeline_mode = #tpu.pipeline_mode<synchronous>, transform_indices = @transform_2, window_bounds = array<i64: 8, 128>}]} {
    %c0_i32 = arith.constant 0 : i32
    %0 = arith.cmpi eq, %arg0, %c0_i32 : i32
    %c0_i32_0 = arith.constant 0 : i32
    %1 = arith.cmpi eq, %arg1, %c0_i32_0 : i32
    %2 = arith.andi %0, %1 : i1
    %3 = arith.extui %2 : i1 to i32
    %c0_i32_1 = arith.constant 0 : i32
    %4 = arith.cmpi ne, %3, %c0_i32_1 : i32
    scf.if %4 {
      %cst_39 = arith.constant 0.000000e+00 : f32
      %127 = vector.broadcast %cst_39 : f32 to vector<8x128xf32>
      %c0_40 = arith.constant 0 : index
      %c0_41 = arith.constant 0 : index
      %128 = vector.load %arg4[%c0_40, %c0_41] : memref<8x128xf32, #tpu.memory_space<vmem>>, vector<8x128xf32>
      tpu.vector_store %arg4[%c0_40, %c0_41], %127 {strides = array<i32>} : memref<8x128xf32, #tpu.memory_space<vmem>>, vector<8x128xf32>,
    } else {
    }
    %c0_i32_2 = arith.constant 0 : i32
    %5 = arith.cmpi eq, %arg1, %c0_i32_2 : i32
    %6 = arith.extui %5 : i1 to i32
    %c0_i32_3 = arith.constant 0 : i32
    %7 = arith.cmpi ne, %6, %c0_i32_3 : i32
    scf.if %7 {
      %cst_39 = arith.constant 0.000000e+00 : f32
      %127 = vector.broadcast %cst_39 : f32 to vector<1x128x128xf32>
      %c0_40 = arith.constant 0 : index
      %c0_41 = arith.constant 0 : index
      %c0_42 = arith.constant 0 : index
      %128 = vector.load %arg5[%c0_40, %c0_41, %c0_42] : memref<1x128x128xf32, #tpu.memory_space<vmem>>, vector<1x128x128xf32>
      tpu.vector_store %arg5[%c0_40, %c0_41, %c0_42], %127 {strides = array<i32>} : memref<1x128x128xf32, #tpu.memory_space<vmem>>, vector<1x128x128xf32>,
    } else {
    }
    %c0 = arith.constant 0 : index
    %c0_4 = arith.constant 0 : index
    %8 = vector.load %arg2[%c0, %c0_4] : memref<128x128xf32, #tpu.memory_space<vmem>>, vector<128x128xf32>
    %cst = arith.constant dense<0.000000e+00> : vector<128x128xf32>
    %9 = tpu.matmul %8, %8, %cst {dimension_numbers = #tpu.dot_dimension_numbers<[1], [1], [0], [0], [0, 0, 1, 0], [], []>} : vector<128x128xf32>, vector<128x128xf32>, vector<128x128xf32> -> vector<128x128xf32>
    %c1_i32 = arith.constant 1 : i32
    %10 = arith.subi %arg1, %c1_i32 : i32
    %c1_i32_5 = arith.constant 1 : i32
    %11 = arith.addi %10, %c1_i32_5 : i32
    %c1_i32_6 = arith.constant 1 : i32
    %c0_i32_7 = arith.constant 0 : i32
    %12 = arith.cmpi eq, %c1_i32_6, %c0_i32_7 : i32
    %c1_i32_8 = arith.constant 1 : i32
    %13 = arith.select %12, %c1_i32_8, %c1_i32_6 : i32
    %14 = arith.remsi %11, %13 : i32
    %c0_i32_9 = arith.constant 0 : i32
    %15 = arith.cmpi ne, %14, %c0_i32_9 : i32
    %c0_i32_10 = arith.constant 0 : i32
    %16 = arith.cmpi slt, %14, %c0_i32_10 : i32
    %c0_i32_11 = arith.constant 0 : i32
    %17 = arith.cmpi slt, %13, %c0_i32_11 : i32
    %18 = arith.xori %16, %17 : i1
    %19 = arith.andi %18, %15 : i1
    %20 = arith.addi %14, %13 : i32
    %21 = arith.select %19, %20, %14 : i32
    %22 = arith.index_cast %21 : i32 to index
    %c0_12 = arith.constant 0 : index
    %c0_13 = arith.constant 0 : index
    %23 = vector.load %arg5[%22, %c0_12, %c0_13] : memref<1x128x128xf32, #tpu.memory_space<vmem>>, vector<1x128x128xf32>
    %24 = vector.shape_cast %23 : vector<1x128x128xf32> to vector<128x128xf32>
    %cst_14 = arith.constant dense<0.000000e+00> : vector<128x128xf32>
    %25 = tpu.matmul %24, %8, %cst_14 {dimension_numbers = #tpu.dot_dimension_numbers<[1], [1], [0], [0], [0, 0, 1, 0], [], []>} : vector<128x128xf32>, vector<128x128xf32>, vector<128x128xf32> -> vector<128x128xf32>
    %26 = tpu.iota {dimensions = array<i32: 0>} : vector<128x1xi32>
    %27 = tpu.iota {dimensions = array<i32: 1>} : vector<1x128xi32>
    %28 = vector.broadcast %26 : vector<128x1xi32> to vector<128x128xi32>
    %29 = vector.broadcast %27 : vector<1x128xi32> to vector<128x128xi32>
    %30 = arith.cmpi sle, %28, %29 : vector<128x128xi32>
    %31 = arith.select %30, %9, %25 : vector<128x128xi1>, vector<128x128xf32>
    %32 = vector.extract_strided_slice %31 {offsets = [0, 1], sizes = [128, 127], strides = [1, 1]} : vector<128x128xf32> to vector<128x127xf32>
    %33 = vector.extract_strided_slice %31 {offsets = [0, 0], sizes = [128, 1], strides = [1, 1]} : vector<128x128xf32> to vector<128x1xf32>
    %34 = tpu.concatenate %32, %33 in 1 : vector<128x127xf32>, vector<128x1xf32> -> vector<128x128xf32>
    %c1_i32_15 = arith.constant 1 : i32
    %35 = vector.broadcast %c1_i32_15 : i32 to vector<128x1xi32>
    %36 = arith.andi %26, %35 : vector<128x1xi32>
    %c0_i32_16 = arith.constant 0 : i32
    %37 = vector.broadcast %c0_i32_16 : i32 to vector<128x1xi32>
    %38 = arith.cmpi ne, %36, %37 : vector<128x1xi32>
    %39 = vector.shape_cast %38 : vector<128x1xi1> to vector<128x1xi1>
    %40 = vector.broadcast %39 : vector<128x1xi1> to vector<128x128xi1>
    %41 = arith.select %40, %34, %31 : vector<128x128xi1>, vector<128x128xf32>
    %42 = vector.extract_strided_slice %41 {offsets = [0, 2], sizes = [128, 126], strides = [1, 1]} : vector<128x128xf32> to vector<128x126xf32>
    %43 = vector.extract_strided_slice %41 {offsets = [0, 0], sizes = [128, 2], strides = [1, 1]} : vector<128x128xf32> to vector<128x2xf32>
    %44 = tpu.concatenate %42, %43 in 1 : vector<128x126xf32>, vector<128x2xf32> -> vector<128x128xf32>
    %c2_i32 = arith.constant 2 : i32
    %45 = vector.broadcast %c2_i32 : i32 to vector<128x1xi32>
    %46 = arith.andi %26, %45 : vector<128x1xi32>
    %c0_i32_17 = arith.constant 0 : i32
    %47 = vector.broadcast %c0_i32_17 : i32 to vector<128x1xi32>
    %48 = arith.cmpi ne, %46, %47 : vector<128x1xi32>
    %49 = vector.shape_cast %48 : vector<128x1xi1> to vector<128x1xi1>
    %50 = vector.broadcast %49 : vector<128x1xi1> to vector<128x128xi1>
    %51 = arith.select %50, %44, %41 : vector<128x128xi1>, vector<128x128xf32>
    %52 = vector.extract_strided_slice %51 {offsets = [0, 4], sizes = [128, 124], strides = [1, 1]} : vector<128x128xf32> to vector<128x124xf32>
    %53 = vector.extract_strided_slice %51 {offsets = [0, 0], sizes = [128, 4], strides = [1, 1]} : vector<128x128xf32> to vector<128x4xf32>
    %54 = tpu.concatenate %52, %53 in 1 : vector<128x124xf32>, vector<128x4xf32> -> vector<128x128xf32>
    %c4_i32 = arith.constant 4 : i32
    %55 = vector.broadcast %c4_i32 : i32 to vector<128x1xi32>
    %56 = arith.andi %26, %55 : vector<128x1xi32>
    %c0_i32_18 = arith.constant 0 : i32
    %57 = vector.broadcast %c0_i32_18 : i32 to vector<128x1xi32>
    %58 = arith.cmpi ne, %56, %57 : vector<128x1xi32>
    %59 = vector.shape_cast %58 : vector<128x1xi1> to vector<128x1xi1>
    %60 = vector.broadcast %59 : vector<128x1xi1> to vector<128x128xi1>
    %61 = arith.select %60, %54, %51 : vector<128x128xi1>, vector<128x128xf32>
    %62 = vector.extract_strided_slice %61 {offsets = [0, 8], sizes = [128, 120], strides = [1, 1]} : vector<128x128xf32> to vector<128x120xf32>
    %63 = vector.extract_strided_slice %61 {offsets = [0, 0], sizes = [128, 8], strides = [1, 1]} : vector<128x128xf32> to vector<128x8xf32>
    %64 = tpu.concatenate %62, %63 in 1 : vector<128x120xf32>, vector<128x8xf32> -> vector<128x128xf32>
    %c8_i32 = arith.constant 8 : i32
    %65 = vector.broadcast %c8_i32 : i32 to vector<128x1xi32>
    %66 = arith.andi %26, %65 : vector<128x1xi32>
    %c0_i32_19 = arith.constant 0 : i32
    %67 = vector.broadcast %c0_i32_19 : i32 to vector<128x1xi32>
    %68 = arith.cmpi ne, %66, %67 : vector<128x1xi32>
    %69 = vector.shape_cast %68 : vector<128x1xi1> to vector<128x1xi1>
    %70 = vector.broadcast %69 : vector<128x1xi1> to vector<128x128xi1>
    %71 = arith.select %70, %64, %61 : vector<128x128xi1>, vector<128x128xf32>
    %72 = vector.extract_strided_slice %71 {offsets = [0, 16], sizes = [128, 112], strides = [1, 1]} : vector<128x128xf32> to vector<128x112xf32>
    %73 = vector.extract_strided_slice %71 {offsets = [0, 0], sizes = [128, 16], strides = [1, 1]} : vector<128x128xf32> to vector<128x16xf32>
    %74 = tpu.concatenate %72, %73 in 1 : vector<128x112xf32>, vector<128x16xf32> -> vector<128x128xf32>
    %c16_i32 = arith.constant 16 : i32
    %75 = vector.broadcast %c16_i32 : i32 to vector<128x1xi32>
    %76 = arith.andi %26, %75 : vector<128x1xi32>
    %c0_i32_20 = arith.constant 0 : i32
    %77 = vector.broadcast %c0_i32_20 : i32 to vector<128x1xi32>
    %78 = arith.cmpi ne, %76, %77 : vector<128x1xi32>
    %79 = vector.shape_cast %78 : vector<128x1xi1> to vector<128x1xi1>
    %80 = vector.broadcast %79 : vector<128x1xi1> to vector<128x128xi1>
    %81 = arith.select %80, %74, %71 : vector<128x128xi1>, vector<128x128xf32>
    %82 = vector.extract_strided_slice %81 {offsets = [0, 32], sizes = [128, 96], strides = [1, 1]} : vector<128x128xf32> to vector<128x96xf32>
    %83 = vector.extract_strided_slice %81 {offsets = [0, 0], sizes = [128, 32], strides = [1, 1]} : vector<128x128xf32> to vector<128x32xf32>
    %84 = tpu.concatenate %82, %83 in 1 : vector<128x96xf32>, vector<128x32xf32> -> vector<128x128xf32>
    %c32_i32 = arith.constant 32 : i32
    %85 = vector.broadcast %c32_i32 : i32 to vector<128x1xi32>
    %86 = arith.andi %26, %85 : vector<128x1xi32>
    %c0_i32_21 = arith.constant 0 : i32
    %87 = vector.broadcast %c0_i32_21 : i32 to vector<128x1xi32>
    %88 = arith.cmpi ne, %86, %87 : vector<128x1xi32>
    %89 = vector.shape_cast %88 : vector<128x1xi1> to vector<128x1xi1>
    %90 = vector.broadcast %89 : vector<128x1xi1> to vector<128x128xi1>
    %91 = arith.select %90, %84, %81 : vector<128x128xi1>, vector<128x128xf32>
    %92 = vector.extract_strided_slice %91 {offsets = [0, 64], sizes = [128, 64], strides = [1, 1]} : vector<128x128xf32> to vector<128x64xf32>
    %93 = vector.extract_strided_slice %91 {offsets = [0, 0], sizes = [128, 64], strides = [1, 1]} : vector<128x128xf32> to vector<128x64xf32>
    %94 = tpu.concatenate %92, %93 in 1 : vector<128x64xf32>, vector<128x64xf32> -> vector<128x128xf32>
    %c64_i32 = arith.constant 64 : i32
    %95 = vector.broadcast %c64_i32 : i32 to vector<128x1xi32>
    %96 = arith.andi %26, %95 : vector<128x1xi32>
    %c0_i32_22 = arith.constant 0 : i32
    %97 = vector.broadcast %c0_i32_22 : i32 to vector<128x1xi32>
    %98 = arith.cmpi ne, %96, %97 : vector<128x1xi32>
    %99 = vector.shape_cast %98 : vector<128x1xi1> to vector<128x1xi1>
    %100 = vector.broadcast %99 : vector<128x1xi1> to vector<128x128xi1>
    %101 = arith.select %100, %94, %91 : vector<128x128xi1>, vector<128x128xf32>
    %cst_23 = arith.constant dense<0.000000e+00> : vector<128xf32>
    %102 = vector.multi_reduction <add>, %101, %cst_23 [0] : vector<128x128xf32> to vector<128xf32>
    %103 = vector.shape_cast %102 : vector<128xf32> to vector<1x128xf32>
    %c0_24 = arith.constant 0 : index
    %c0_25 = arith.constant 0 : index
    %104 = vector.load %arg4[%c0_24, %c0_25] : memref<8x128xf32, #tpu.memory_space<vmem>>, vector<8x128xf32>
    %105 = vector.broadcast %103 : vector<1x128xf32> to vector<8x128xf32>
    %106 = arith.addf %104, %105 : vector<8x128xf32>
    %c0_26 = arith.constant 0 : index
    %c0_27 = arith.constant 0 : index
    %107 = vector.load %arg4[%c0_26, %c0_27] : memref<8x128xf32, #tpu.memory_space<vmem>>, vector<8x128xf32>
    tpu.vector_store %arg4[%c0_26, %c0_27], %106 {strides = array<i32>} : memref<8x128xf32, #tpu.memory_space<vmem>>, vector<8x128xf32>,
    %c1_i32_28 = arith.constant 1 : i32
    %c0_i32_29 = arith.constant 0 : i32
    %108 = arith.cmpi eq, %c1_i32_28, %c0_i32_29 : i32
    %c1_i32_30 = arith.constant 1 : i32
    %109 = arith.select %108, %c1_i32_30, %c1_i32_28 : i32
    %110 = arith.remsi %arg1, %109 : i32
    %c0_i32_31 = arith.constant 0 : i32
    %111 = arith.cmpi ne, %110, %c0_i32_31 : i32
    %c0_i32_32 = arith.constant 0 : i32
    %112 = arith.cmpi slt, %110, %c0_i32_32 : i32
    %c0_i32_33 = arith.constant 0 : i32
    %113 = arith.cmpi slt, %109, %c0_i32_33 : i32
    %114 = arith.xori %112, %113 : i1
    %115 = arith.andi %114, %111 : i1
    %116 = arith.addi %110, %109 : i32
    %117 = arith.select %115, %116, %110 : i32
    %118 = arith.index_cast %117 : i32 to index
    %c0_34 = arith.constant 0 : index
    %c0_35 = arith.constant 0 : index
    %119 = vector.load %arg5[%118, %c0_34, %c0_35] : memref<1x128x128xf32, #tpu.memory_space<vmem>>, vector<1x128x128xf32>
    %120 = vector.shape_cast %119 : vector<1x128x128xf32> to vector<128x128xf32>
    %121 = vector.shape_cast %8 : vector<128x128xf32> to vector<1x128x128xf32>
    tpu.vector_store %arg5[%118, %c0_34, %c0_35], %121 {strides = array<i32>} : memref<1x128x128xf32, #tpu.memory_space<vmem>>, vector<1x128x128xf32>,
    %c0_i32_36 = arith.constant 0 : i32
    %122 = arith.cmpi eq, %arg0, %c0_i32_36 : i32
    %c0_i32_37 = arith.constant 0 : i32
    %123 = arith.cmpi eq, %arg1, %c0_i32_37 : i32
    %124 = arith.andi %122, %123 : i1
    %125 = arith.extui %124 : i1 to i32
    %c0_i32_38 = arith.constant 0 : i32
    %126 = arith.cmpi ne, %125, %c0_i32_38 : i32
    scf.if %126 {
      %c0_39 = arith.constant 0 : index
      %c0_40 = arith.constant 0 : index
      %127 = vector.load %arg4[%c0_39, %c0_40] : memref<8x128xf32, #tpu.memory_space<vmem>>, vector<8x128xf32>
      %c0_41 = arith.constant 0 : index
      %c0_42 = arith.constant 0 : index
      %128 = vector.load %arg3[%c0_41, %c0_42] : memref<1x128xf32, #tpu.memory_space<vmem>>, vector<1x128xf32>
      %129 = vector.broadcast %128 : vector<1x128xf32> to vector<8x128xf32>
      %130 = arith.mulf %127, %129 : vector<8x128xf32>
      %c0_43 = arith.constant 0 : index
      %c0_44 = arith.constant 0 : index
      %131 = vector.load %arg4[%c0_43, %c0_44] : memref<8x128xf32, #tpu.memory_space<vmem>>, vector<8x128xf32>
      tpu.vector_store %arg4[%c0_43, %c0_44], %130 {strides = array<i32>} : memref<8x128xf32, #tpu.memory_space<vmem>>, vector<8x128xf32>,
    } else {
    }
    return
  }
  func.func @transform_0(%arg0: i32, %arg1: i32) -> (i32, i32) {
    %c0_i32 = arith.constant 0 : i32
    return %arg1, %arg0 : i32, i32
  }
  func.func @transform_1(%arg0: i32, %arg1: i32) -> (i32, i32) {
    %c0_i32 = arith.constant 0 : i32
    %c0_i32_0 = arith.constant 0 : i32
    %c0_i32_1 = arith.constant 0 : i32
    return %c0_i32, %c0_i32_0 : i32, i32
  }
  func.func @transform_2(%arg0: i32, %arg1: i32) -> (i32, i32) {
    %c0_i32 = arith.constant 0 : i32
    %c0_i32_0 = arith.constant 0 : i32
    %c0_i32_1 = arith.constant 0 : i32
    return %c0_i32, %c0_i32_0 : i32, i32
  }
}

</mosaic_0001>

<llo_original>
// kernel: tpu_custom_call.1
$region0: #{tpu_custom_call.1}
  #allocation0 [shape = 'u32[]', space=smem, size = 0x4, offset = 0x4, fixed_abs, tag = 'smem constant byte address 0x4 - core index']
  #allocation1 [shape = 'u32[144,128]{1,0:T(1,128)}', space=vmem, size = 0x12000, scoped, tag = 'internal scratch']
  #allocation2 [shape = 'f32[1,128,128]{2,1,0:T(8,128)}', space=vmem, size = 0x10000, scoped, tag = 'scratch operand']
  %s0 = inlined_call_operand.hbm [shape: f32[128,128], index: 0, kind: input, shape index: {}]
  %s1 = inlined_call_operand.vmem [shape: f32[1,128], index: 1, kind: input, shape index: {}]
  %s2 = inlined_call_operand.hbm [shape: f32[8,128], index: 2, kind: output, shape index: {}]
  %s3 = sld [smem:[#allocation0]]
  $region34: #{tpu_custom_call.1} parent=0
    _
  %s5 = ssub.s32 1, %s3
  %s6 = scalar_select 0, %s5, %s3
  $region1: #{tpu_custom_call.1} parent=0
    #allocation3 [shape = 'u8[65536]{0}', space=vmem, size = 0x10000, scoped, tag = 'input window, operand 0, single buffered']
    #allocation4 [shape = 's32[1]{0}', space=sflag, size = 0x4, scoped, tag = 'scoped memory for tpu_custom_call.1']
    #allocation5 [shape = 's32[1]{0}', space=sflag, size = 0x4, scoped, tag = 'scoped memory for tpu_custom_call.1']
    #allocation6 [shape = 'u8[4096]{0}', space=vmem, size = 0x1000, scoped, tag = 'output window, operand 0, single buffered']
    %7 = vsyncpa [#allocation4], 0
    %8 = vsyncpa [#allocation5], 0
    // Predicated region
    $region2: #{tpu_custom_call.1} parent=1 // pred_check
      _
    $region3: #{tpu_custom_call.1} parent=1 // pred_check_branch
      %10 = sbr.rel (0) target = $region5
    $region4: #{tpu_custom_call.1} parent=1 // pred_region
      %s12 = ssub.s32 2048, 2048
      %13 = vsyncadd [#allocation4], %s12
      %s14 = sshll.u32 [#allocation3], 4
      %s15 = int_to_ptr.vmem [resolvable:$true] %s14
      %20 = dma.hbm_to_vmem [thread:$0]  %s0, 2048, %s15, [#allocation4], 128, 128, 8
    $region5: #{tpu_custom_call.1} parent=1 // pred_fallthru
      _
    // Predicated region
    $region6: #{tpu_custom_call.1} parent=1 // pred_check
      _
    $region7: #{tpu_custom_call.1} parent=1 // pred_check_branch
      %22 = sbr.rel (0) target = $region9
    $region8: #{tpu_custom_call.1} parent=1 // pred_region
      _
    $region9: #{tpu_custom_call.1} parent=1 // pred_fallthru
      _
    // Predicated region
    $region10: #{tpu_custom_call.1} parent=1 // pred_check
      _
    $region11: #{tpu_custom_call.1} parent=1 // pred_check_branch
      %24 = sbr.rel (0) target = $region13
    $region12: #{tpu_custom_call.1} parent=1 // pred_region
      %25 = dma.done [#allocation4], 2048
    $region13: #{tpu_custom_call.1} parent=1 // pred_fallthru
      _
    %p26 = scmp.eq.s32.totalorder 0, 0
    %p27 = scmp.eq.s32.totalorder 0, 0
    %p28 = pnand %p26, %p27
    %p29 = pneg %p28
    // Predicated region
    $region14: #{tpu_custom_call.1} parent=1 // pred_check
      _
    $region15: #{tpu_custom_call.1} parent=1 // pred_check_branch
      %31 = sbr.rel (%p28) target = $region17
    $region16: #{tpu_custom_call.1} parent=1 // pred_region
      %32 = vst [vmem:[#allocation6] sm:$0xff] 0.0
    $region17: #{tpu_custom_call.1} parent=1 // pred_fallthru
      _
    // Predicated region
    $region18: #{tpu_custom_call.1} parent=1 // pred_check
      %p33 = pneg %p27
    $region19: #{tpu_custom_call.1} parent=1 // pred_check_branch
      %35 = sbr.rel (%p33) target = $region21
    $region20: #{tpu_custom_call.1} parent=1 // pred_region
      %36 = vst [vmem:[#allocation2] sm:$0xff] 0.0
      %37 = vst [vmem:[#allocation2 + $0x8] sm:$0xff] 0.0
      %38 = vst [vmem:[#allocation2 + $0x10] sm:$0xff] 0.0
      %39 = vst [vmem:[#allocation2 + $0x18] sm:$0xff] 0.0
      %40 = vst [vmem:[#allocation2 + $0x20] sm:$0xff] 0.0
      %41 = vst [vmem:[#allocation2 + $0x28] sm:$0xff] 0.0
      %42 = vst [vmem:[#allocation2 + $0x30] sm:$0xff] 0.0
      %43 = vst [vmem:[#allocation2 + $0x38] sm:$0xff] 0.0
      %44 = vst [vmem:[#allocation2 + $0x40] sm:$0xff] 0.0
      %45 = vst [vmem:[#allocation2 + $0x48] sm:$0xff] 0.0
      %46 = vst [vmem:[#allocation2 + $0x50] sm:$0xff] 0.0
      %47 = vst [vmem:[#allocation2 + $0x58] sm:$0xff] 0.0
      %48 = vst [vmem:[#allocation2 + $0x60] sm:$0xff] 0.0
      %49 = vst [vmem:[#allocation2 + $0x68] sm:$0xff] 0.0
      %50 = vst [vmem:[#allocation2 + $0x70] sm:$0xff] 0.0
      %51 = vst [vmem:[#allocation2 + $0x78] sm:$0xff] 0.0
    $region21: #{tpu_custom_call.1} parent=1 // pred_fallthru
      _
    %v52 = vld [vmem:[#allocation3] sm:$0xff]
    %v53 = vld [vmem:[#allocation3 + $0x8] sm:$0xff]
    %v54 = vld [vmem:[#allocation3 + $0x10] sm:$0xff]
    %v55 = vld [vmem:[#allocation3 + $0x18] sm:$0xff]
    %v56 = vld [vmem:[#allocation3 + $0x20] sm:$0xff]
    %v57 = vld [vmem:[#allocation3 + $0x28] sm:$0xff]
    %v58 = vld [vmem:[#allocation3 + $0x30] sm:$0xff]
    %v59 = vld [vmem:[#allocation3 + $0x38] sm:$0xff]
    %v60 = vld [vmem:[#allocation3 + $0x40] sm:$0xff]
    %v61 = vld [vmem:[#allocation3 + $0x48] sm:$0xff]
    %v62 = vld [vmem:[#allocation3 + $0x50] sm:$0xff]
    %v63 = vld [vmem:[#allocation3 + $0x58] sm:$0xff]
    %v64 = vld [vmem:[#allocation3 + $0x60] sm:$0xff]
    %v65 = vld [vmem:[#allocation3 + $0x68] sm:$0xff]
    %v66 = vld [vmem:[#allocation3 + $0x70] sm:$0xff]
    %v67 = vld [vmem:[#allocation3 + $0x78] sm:$0xff]
    %68 = vmatprep.subr.mxu0 0.0
    %69 = vmatpush1.xpose.msra.mxu0 %v52
    %70 = vmatprep.subr.mxu0 0.0
    %71 = vmatpush1.xpose.msra.mxu0 %v53
    %72 = vmatprep.subr.mxu0 0.0
    %73 = vmatpush1.xpose.msra.mxu0 %v54
    %74 = vmatprep.subr.mxu0 0.0
    %75 = vmatpush1.xpose.msra.mxu0 %v55
    %76 = vmatprep.subr.mxu0 0.0
    %77 = vmatpush1.xpose.msra.mxu0 %v56
    %78 = vmatprep.subr.mxu0 0.0
    %79 = vmatpush1.xpose.msra.mxu0 %v57
    %80 = vmatprep.subr.mxu0 0.0
    %81 = vmatpush1.xpose.msra.mxu0 %v58
    %82 = vmatprep.subr.mxu0 0.0
    %83 = vmatpush1.xpose.msra.mxu0 %v59
    %84 = vmatprep.subr.mxu0 0.0
    %85 = vmatpush1.xpose.msra.mxu0 %v60
    %86 = vmatprep.subr.mxu0 0.0
    %87 = vmatpush1.xpose.msra.mxu0 %v61
    %88 = vmatprep.subr.mxu0 0.0
    %89 = vmatpush1.xpose.msra.mxu0 %v62
    %90 = vmatprep.subr.mxu0 0.0
    %91 = vmatpush1.xpose.msra.mxu0 %v63
    %92 = vmatprep.subr.mxu0 0.0
    %93 = vmatpush1.xpose.msra.mxu0 %v64
    %94 = vmatprep.subr.mxu0 0.0
    %95 = vmatpush1.xpose.msra.mxu0 %v65
    %96 = vmatprep.subr.mxu0 0.0
    %97 = vmatpush1.xpose.msra.mxu0 %v66
    %98 = vmatprep.subr.mxu0 0.0
    %99 = vmatpush1.xpose.msra.mxu0 %v67
    %100 = vmatprep.subr.mxu0 0.0
    %101 = vmatpush1.xpose.msra.mxu0 0.0
    %102 = vmatprep.subr.mxu0 0.0
    %103 = vmatpush1.xpose.msra.mxu0 0.0
    %104 = vmatprep.subr.mxu0 0.0
    %105 = vmatpush1.xpose.msra.mxu0 0.0
    %106 = vmatprep.subr.mxu0 0.0
    %107 = vmatpush1.xpose.msra.mxu0 0.0
    %108 = vmatprep.subr.mxu0 0.0
    %109 = vmatpush1.xpose.msra.mxu0 0.0
    %110 = vmatprep.subr.mxu0 0.0
    %111 = vmatpush1.xpose.msra.mxu0 0.0
    %112 = vmatprep.subr.mxu0 0.0
    %113 = vmatpush1.xpose.msra.mxu0 0.0
    %114 = vmatprep.subr.mxu0 0.0
    %115 = vmatpush1.xpose.msra.mxu0 0.0
    %116 = vmatprep.subr.mxu0 0.0
    %117 = vmatpush1.xpose.msra.mxu0 0.0
    %118 = vmatprep.subr.mxu0 0.0
    %119 = vmatpush1.xpose.msra.mxu0 0.0
    %120 = vmatprep.subr.mxu0 0.0
    %121 = vmatpush1.xpose.msra.mxu0 0.0
    %122 = vmatprep.subr.mxu0 0.0
    %123 = vmatpush1.xpose.msra.mxu0 0.0
    %124 = vmatprep.subr.mxu0 0.0
    %125 = vmatpush1.xpose.msra.mxu0 0.0
    %126 = vmatprep.subr.mxu0 0.0
    %127 = vmatpush1.xpose.msra.mxu0 0.0
    %128 = vmatprep.subr.mxu0 0.0
    %129 = vmatpush1.xpose.msra.mxu0 0.0
    %130 = vmatprep.subr.mxu0 0.0
    %131 = vmatpush1.xpose.msra.mxu0 0.0
    %132 = vmatprep.mubr.f32.mxu0 0.0
    %133 = vmatmul.mubr.f32.gmra.mrb[0].mxu0 %v52
    %v134 = vpop.f32.mrb[0].mxu0
    %v135 = vadd.f32 0.0, %v134
    %v136 = vpop.f32.mrb[0].mxu0
    %137 = vmatprep.mubr.f32.mxu0 0.0
    %138 = vmatmul.mubr.f32.gmra.mrb[0].mxu0 %v53
    %v139 = vpop.f32.mrb[0].mxu0
    %v140 = vadd.f32 0.0, %v139
    %v141 = vpop.f32.mrb[0].mxu0
    %142 = vmatprep.mubr.f32.mxu0 0.0
    %143 = vmatmul.mubr.f32.gmra.mrb[0].mxu0 %v54
    %v144 = vpop.f32.mrb[0].mxu0
    %v145 = vadd.f32 0.0, %v144
    %v146 = vpop.f32.mrb[0].mxu0
    %147 = vmatprep.mubr.f32.mxu0 0.0
    %148 = vmatmul.mubr.f32.gmra.mrb[0].mxu0 %v55
    %v149 = vpop.f32.mrb[0].mxu0
    %v150 = vadd.f32 0.0, %v149
    %v151 = vpop.f32.mrb[0].mxu0
    %152 = vmatprep.mubr.f32.mxu0 0.0
    %153 = vmatmul.mubr.f32.gmra.mrb[0].mxu0 %v56
    %v154 = vpop.f32.mrb[0].mxu0
    %v155 = vadd.f32 0.0, %v154
    %v156 = vpop.f32.mrb[0].mxu0
    %157 = vmatprep.mubr.f32.mxu0 0.0
    %158 = vmatmul.mubr.f32.gmra.mrb[0].mxu0 %v57
    %v159 = vpop.f32.mrb[0].mxu0
    %v160 = vadd.f32 0.0, %v159
    %v161 = vpop.f32.mrb[0].mxu0
    %162 = vmatprep.mubr.f32.mxu0 0.0
    %163 = vmatmul.mubr.f32.gmra.mrb[0].mxu0 %v58
    %v164 = vpop.f32.mrb[0].mxu0
    %v165 = vadd.f32 0.0, %v164
    %v166 = vpop.f32.mrb[0].mxu0
    %167 = vmatprep.mubr.f32.mxu0 0.0
    %168 = vmatmul.mubr.f32.gmra.mrb[0].mxu0 %v59
    %v169 = vpop.f32.mrb[0].mxu0
    %v170 = vadd.f32 0.0, %v169
    %v171 = vpop.f32.mrb[0].mxu0
    %172 = vmatprep.mubr.f32.mxu0 0.0
    %173 = vmatmul.mubr.f32.gmra.mrb[0].mxu0 %v60
    %v174 = vpop.f32.mrb[0].mxu0
    %v175 = vadd.f32 0.0, %v174
    %v176 = vpop.f32.mrb[0].mxu0
    %177 = vmatprep.mubr.f32.mxu0 0.0
    %178 = vmatmul.mubr.f32.gmra.mrb[0].mxu0 %v61
    %v179 = vpop.f32.mrb[0].mxu0
    %v180 = vadd.f32 0.0, %v179
    %v181 = vpop.f32.mrb[0].mxu0
    %182 = vmatprep.mubr.f32.mxu0 0.0
    %183 = vmatmul.mubr.f32.gmra.mrb[0].mxu0 %v62
    %v184 = vpop.f32.mrb[0].mxu0
    %v185 = vadd.f32 0.0, %v184
    %v186 = vpop.f32.mrb[0].mxu0
    %187 = vmatprep.mubr.f32.mxu0 0.0
    %188 = vmatmul.mubr.f32.gmra.mrb[0].mxu0 %v63
    %v189 = vpop.f32.mrb[0].mxu0
    %v190 = vadd.f32 0.0, %v189
    %v191 = vpop.f32.mrb[0].mxu0
    %192 = vmatprep.mubr.f32.mxu0 0.0
    %193 = vmatmul.mubr.f32.gmra.mrb[0].mxu0 %v64
    %v194 = vpop.f32.mrb[0].mxu0
    %v195 = vadd.f32 0.0, %v194
    %v196 = vpop.f32.mrb[0].mxu0
    %197 = vmatprep.mubr.f32.mxu0 0.0
    %198 = vmatmul.mubr.f32.gmra.mrb[0].mxu0 %v65
    %v199 = vpop.f32.mrb[0].mxu0
    %v200 = vadd.f32 0.0, %v199
    %v201 = vpop.f32.mrb[0].mxu0
    %202 = vmatprep.mubr.f32.mxu0 0.0
    %203 = vmatmul.mubr.f32.gmra.mrb[0].mxu0 %v66
    %v204 = vpop.f32.mrb[0].mxu0
    %v205 = vadd.f32 0.0, %v204
    %v206 = vpop.f32.mrb[0].mxu0
    %207 = vmatprep.mubr.f32.mxu0 0.0
    %208 = vmatmul.mubr.f32.gmra.mrb[0].mxu0 %v67
    %v209 = vpop.f32.mrb[0].mxu0
    %v210 = vadd.f32 0.0, %v209
    %v211 = vpop.f32.mrb[0].mxu0
    %212 = vdwg.mxu0
    %v213 = vld [vmem:[#allocation2] sm:$0xff]
    %v214 = vld [vmem:[#allocation2 + $0x8] sm:$0xff]
    %v215 = vld [vmem:[#allocation2 + $0x10] sm:$0xff]
    %v216 = vld [vmem:[#allocation2 + $0x18] sm:$0xff]
    %v217 = vld [vmem:[#allocation2 + $0x20] sm:$0xff]
    %v218 = vld [vmem:[#allocation2 + $0x28] sm:$0xff]
    %v219 = vld [vmem:[#allocation2 + $0x30] sm:$0xff]
    %v220 = vld [vmem:[#allocation2 + $0x38] sm:$0xff]
    %v221 = vld [vmem:[#allocation2 + $0x40] sm:$0xff]
    %v222 = vld [vmem:[#allocation2 + $0x48] sm:$0xff]
    %v223 = vld [vmem:[#allocation2 + $0x50] sm:$0xff]
    %v224 = vld [vmem:[#allocation2 + $0x58] sm:$0xff]
    %v225 = vld [vmem:[#allocation2 + $0x60] sm:$0xff]
    %v226 = vld [vmem:[#allocation2 + $0x68] sm:$0xff]
    %v227 = vld [vmem:[#allocation2 + $0x70] sm:$0xff]
    %v228 = vld [vmem:[#allocation2 + $0x78] sm:$0xff]
    %229 = vmatprep.subr.mxu0 0.0
    %230 = vmatpush1.xpose.msra.mxu0 %v52
    %231 = vmatprep.subr.mxu0 0.0
    %232 = vmatpush1.xpose.msra.mxu0 %v53
    %233 = vmatprep.subr.mxu0 0.0
    %234 = vmatpush1.xpose.msra.mxu0 %v54
    %235 = vmatprep.subr.mxu0 0.0
    %236 = vmatpush1.xpose.msra.mxu0 %v55
    %237 = vmatprep.subr.mxu0 0.0
    %238 = vmatpush1.xpose.msra.mxu0 %v56
    %239 = vmatprep.subr.mxu0 0.0
    %240 = vmatpush1.xpose.msra.mxu0 %v57
    %241 = vmatprep.subr.mxu0 0.0
    %242 = vmatpush1.xpose.msra.mxu0 %v58
    %243 = vmatprep.subr.mxu0 0.0
    %244 = vmatpush1.xpose.msra.mxu0 %v59
    %245 = vmatprep.subr.mxu0 0.0
    %246 = vmatpush1.xpose.msra.mxu0 %v60
    %247 = vmatprep.subr.mxu0 0.0
    %248 = vmatpush1.xpose.msra.mxu0 %v61
    %249 = vmatprep.subr.mxu0 0.0
    %250 = vmatpush1.xpose.msra.mxu0 %v62
    %251 = vmatprep.subr.mxu0 0.0
    %252 = vmatpush1.xpose.msra.mxu0 %v63
    %253 = vmatprep.subr.mxu0 0.0
    %254 = vmatpush1.xpose.msra.mxu0 %v64
    %255 = vmatprep.subr.mxu0 0.0
    %256 = vmatpush1.xpose.msra.mxu0 %v65
    %257 = vmatprep.subr.mxu0 0.0
    %258 = vmatpush1.xpose.msra.mxu0 %v66
    %259 = vmatprep.subr.mxu0 0.0
    %260 = vmatpush1.xpose.msra.mxu0 %v67
    %261 = vmatprep.subr.mxu0 0.0
    %262 = vmatpush1.xpose.msra.mxu0 0.0
    %263 = vmatprep.subr.mxu0 0.0
    %264 = vmatpush1.xpose.msra.mxu0 0.0
    %265 = vmatprep.subr.mxu0 0.0
    %266 = vmatpush1.xpose.msra.mxu0 0.0
    %267 = vmatprep.subr.mxu0 0.0
    %268 = vmatpush1.xpose.msra.mxu0 0.0
    %269 = vmatprep.subr.mxu0 0.0
    %270 = vmatpush1.xpose.msra.mxu0 0.0
    %271 = vmatprep.subr.mxu0 0.0
    %272 = vmatpush1.xpose.msra.mxu0 0.0
    %273 = vmatprep.subr.mxu0 0.0
    %274 = vmatpush1.xpose.msra.mxu0 0.0
    %275 = vmatprep.subr.mxu0 0.0
    %276 = vmatpush1.xpose.msra.mxu0 0.0
    %277 = vmatprep.subr.mxu0 0.0
    %278 = vmatpush1.xpose.msra.mxu0 0.0
    %279 = vmatprep.subr.mxu0 0.0
    %280 = vmatpush1.xpose.msra.mxu0 0.0
    %281 = vmatprep.subr.mxu0 0.0
    %282 = vmatpush1.xpose.msra.mxu0 0.0
    %283 = vmatprep.subr.mxu0 0.0
    %284 = vmatpush1.xpose.msra.mxu0 0.0
    %285 = vmatprep.subr.mxu0 0.0
    %286 = vmatpush1.xpose.msra.mxu0 0.0
    %287 = vmatprep.subr.mxu0 0.0
    %288 = vmatpush1.xpose.msra.mxu0 0.0
    %289 = vmatprep.subr.mxu0 0.0
    %290 = vmatpush1.xpose.msra.mxu0 0.0
    %291 = vmatprep.subr.mxu0 0.0
    %292 = vmatpush1.xpose.msra.mxu0 0.0
    %293 = vmatprep.mubr.f32.mxu0 0.0
    %294 = vmatmul.mubr.f32.gmra.mrb[0].mxu0 %v213
    %v295 = vpop.f32.mrb[0].mxu0
    %v296 = vadd.f32 0.0, %v295
    %v297 = vpop.f32.mrb[0].mxu0
    %298 = vmatprep.mubr.f32.mxu0 0.0
    %299 = vmatmul.mubr.f32.gmra.mrb[0].mxu0 %v214
    %v300 = vpop.f32.mrb[0].mxu0
    %v301 = vadd.f32 0.0, %v300
    %v302 = vpop.f32.mrb[0].mxu0
    %303 = vmatprep.mubr.f32.mxu0 0.0
    %304 = vmatmul.mubr.f32.gmra.mrb[0].mxu0 %v215
    %v305 = vpop.f32.mrb[0].mxu0
    %v306 = vadd.f32 0.0, %v305
    %v307 = vpop.f32.mrb[0].mxu0
    %308 = vmatprep.mubr.f32.mxu0 0.0
    %309 = vmatmul.mubr.f32.gmra.mrb[0].mxu0 %v216
    %v310 = vpop.f32.mrb[0].mxu0
    %v311 = vadd.f32 0.0, %v310
    %v312 = vpop.f32.mrb[0].mxu0
    %313 = vmatprep.mubr.f32.mxu0 0.0
    %314 = vmatmul.mubr.f32.gmra.mrb[0].mxu0 %v217
    %v315 = vpop.f32.mrb[0].mxu0
    %v316 = vadd.f32 0.0, %v315
    %v317 = vpop.f32.mrb[0].mxu0
    %318 = vmatprep.mubr.f32.mxu0 0.0
    %319 = vmatmul.mubr.f32.gmra.mrb[0].mxu0 %v218
    %v320 = vpop.f32.mrb[0].mxu0
    %v321 = vadd.f32 0.0, %v320
    %v322 = vpop.f32.mrb[0].mxu0
    %323 = vmatprep.mubr.f32.mxu0 0.0
    %324 = vmatmul.mubr.f32.gmra.mrb[0].mxu0 %v219
    %v325 = vpop.f32.mrb[0].mxu0
    %v326 = vadd.f32 0.0, %v325
    %v327 = vpop.f32.mrb[0].mxu0
    %328 = vmatprep.mubr.f32.mxu0 0.0
    %329 = vmatmul.mubr.f32.gmra.mrb[0].mxu0 %v220
    %v330 = vpop.f32.mrb[0].mxu0
    %v331 = vadd.f32 0.0, %v330
    %v332 = vpop.f32.mrb[0].mxu0
    %333 = vmatprep.mubr.f32.mxu0 0.0
    %334 = vmatmul.mubr.f32.gmra.mrb[0].mxu0 %v221
    %v335 = vpop.f32.mrb[0].mxu0
    %v336 = vadd.f32 0.0, %v335
    %v337 = vpop.f32.mrb[0].mxu0
    %338 = vmatprep.mubr.f32.mxu0 0.0
    %339 = vmatmul.mubr.f32.gmra.mrb[0].mxu0 %v222
    %v340 = vpop.f32.mrb[0].mxu0
    %v341 = vadd.f32 0.0, %v340
    %v342 = vpop.f32.mrb[0].mxu0
    %343 = vmatprep.mubr.f32.mxu0 0.0
    %344 = vmatmul.mubr.f32.gmra.mrb[0].mxu0 %v223
    %v345 = vpop.f32.mrb[0].mxu0
    %v346 = vadd.f32 0.0, %v345
    %v347 = vpop.f32.mrb[0].mxu0
    %348 = vmatprep.mubr.f32.mxu0 0.0
    %349 = vmatmul.mubr.f32.gmra.mrb[0].mxu0 %v224
    %v350 = vpop.f32.mrb[0].mxu0
    %v351 = vadd.f32 0.0, %v350
    %v352 = vpop.f32.mrb[0].mxu0
    %353 = vmatprep.mubr.f32.mxu0 0.0
    %354 = vmatmul.mubr.f32.gmra.mrb[0].mxu0 %v225
    %v355 = vpop.f32.mrb[0].mxu0
    %v356 = vadd.f32 0.0, %v355
    %v357 = vpop.f32.mrb[0].mxu0
    %358 = vmatprep.mubr.f32.mxu0 0.0
    %359 = vmatmul.mubr.f32.gmra.mrb[0].mxu0 %v226
    %v360 = vpop.f32.mrb[0].mxu0
    %v361 = vadd.f32 0.0, %v360
    %v362 = vpop.f32.mrb[0].mxu0
    %363 = vmatprep.mubr.f32.mxu0 0.0
    %364 = vmatmul.mubr.f32.gmra.mrb[0].mxu0 %v227
    %v365 = vpop.f32.mrb[0].mxu0
    %v366 = vadd.f32 0.0, %v365
    %v367 = vpop.f32.mrb[0].mxu0
    %368 = vmatprep.mubr.f32.mxu0 0.0
    %369 = vmatmul.mubr.f32.gmra.mrb[0].mxu0 %v228
    %v370 = vpop.f32.mrb[0].mxu0
    %v371 = vadd.f32 0.0, %v370
    %v372 = vpop.f32.mrb[0].mxu0
    %373 = vdwg.mxu0
    %v374 = vlaneseq
    %v375 = vshrl.u32 %v374, 7
    %v376 = vadd.s32 %v375, 8
    %v377 = vadd.s32 %v375, 16
    %v378 = vadd.s32 %v375, 24
    %v379 = vadd.s32 %v375, 32
    %v380 = vadd.s32 %v375, 40
    %v381 = vadd.s32 %v375, 48
    %v382 = vadd.s32 %v375, 56
    %v383 = vadd.s32 %v375, 64
    %v384 = vadd.s32 %v375, 72
    %v385 = vadd.s32 %v375, 80
    %v386 = vadd.s32 %v375, 88
    %v387 = vadd.s32 %v375, 96
    %v388 = vadd.s32 %v375, 104
    %v389 = vadd.s32 %v375, 112
    %v390 = vadd.s32 %v375, 120
    %v391 = vlaneseq
    %v392 = vand.u32 %v391, 127
    %vm393 = vcmp.le.s32.totalorder %v375, %v392
    %vm394 = vcmp.le.s32.totalorder %v376, %v392
    %vm395 = vcmp.le.s32.totalorder %v377, %v392
    %vm396 = vcmp.le.s32.totalorder %v378, %v392
    %vm397 = vcmp.le.s32.totalorder %v379, %v392
    %vm398 = vcmp.le.s32.totalorder %v380, %v392
    %vm399 = vcmp.le.s32.totalorder %v381, %v392
    %vm400 = vcmp.le.s32.totalorder %v382, %v392
    %vm401 = vcmp.le.s32.totalorder %v383, %v392
    %vm402 = vcmp.le.s32.totalorder %v384, %v392
    %vm403 = vcmp.le.s32.totalorder %v385, %v392
    %vm404 = vcmp.le.s32.totalorder %v386, %v392
    %vm405 = vcmp.le.s32.totalorder %v387, %v392
    %vm406 = vcmp.le.s32.totalorder %v388, %v392
    %vm407 = vcmp.le.s32.totalorder %v389, %v392
    %vm408 = vcmp.le.s32.totalorder %v390, %v392
    %v409 = vsel %vm393, %v135, %v296
    %v410 = vsel %vm394, %v140, %v301
    %v411 = vsel %vm395, %v145, %v306
    %v412 = vsel %vm396, %v150, %v311
    %v413 = vsel %vm397, %v155, %v316
    %v414 = vsel %vm398, %v160, %v321
    %v415 = vsel %vm399, %v165, %v326
    %v416 = vsel %vm400, %v170, %v331
    %v417 = vsel %vm401, %v175, %v336
    %v418 = vsel %vm402, %v180, %v341
    %v419 = vsel %vm403, %v185, %v346
    %v420 = vsel %vm404, %v190, %v351
    %v421 = vsel %vm405, %v195, %v356
    %v422 = vsel %vm406, %v200, %v361
    %v423 = vsel %vm407, %v205, %v366
    %v424 = vsel %vm408, %v210, %v371
    %441 = vrot.lane.b32.xlu0 %v409, 127
    %v442 = vpop.permute.xlu0 %441
    %443 = vrot.lane.b32.xlu0 %v410, 127
    %v444 = vpop.permute.xlu0 %443
    %445 = vrot.lane.b32.xlu0 %v411, 127
    %v446 = vpop.permute.xlu0 %445
    %447 = vrot.lane.b32.xlu0 %v412, 127
    %v448 = vpop.permute.xlu0 %447
    %449 = vrot.lane.b32.xlu0 %v413, 127
    %v450 = vpop.permute.xlu0 %449
    %451 = vrot.lane.b32.xlu0 %v414, 127
    %v452 = vpop.permute.xlu0 %451
    %453 = vrot.lane.b32.xlu0 %v415, 127
    %v454 = vpop.permute.xlu0 %453
    %455 = vrot.lane.b32.xlu0 %v416, 127
    %v456 = vpop.permute.xlu0 %455
    %457 = vrot.lane.b32.xlu0 %v417, 127
    %v458 = vpop.permute.xlu0 %457
    %459 = vrot.lane.b32.xlu0 %v418, 127
    %v460 = vpop.permute.xlu0 %459
    %461 = vrot.lane.b32.xlu0 %v419, 127
    %v462 = vpop.permute.xlu0 %461
    %463 = vrot.lane.b32.xlu0 %v420, 127
    %v464 = vpop.permute.xlu0 %463
    %465 = vrot.lane.b32.xlu0 %v421, 127
    %v466 = vpop.permute.xlu0 %465
    %467 = vrot.lane.b32.xlu0 %v422, 127
    %v468 = vpop.permute.xlu0 %467
    %469 = vrot.lane.b32.xlu0 %v423, 127
    %v470 = vpop.permute.xlu0 %469
    %471 = vrot.lane.b32.xlu0 %v424, 127
    %v472 = vpop.permute.xlu0 %471
    %v489 = vand.u32 %v375, 1
    %v490 = vand.u32 %v376, 1
    %v491 = vand.u32 %v377, 1
    %v492 = vand.u32 %v378, 1
    %v493 = vand.u32 %v379, 1
    %v494 = vand.u32 %v380, 1
    %v495 = vand.u32 %v381, 1
    %v496 = vand.u32 %v382, 1
    %v497 = vand.u32 %v383, 1
    %v498 = vand.u32 %v384, 1
    %v499 = vand.u32 %v385, 1
    %v500 = vand.u32 %v386, 1
    %v501 = vand.u32 %v387, 1
    %v502 = vand.u32 %v388, 1
    %v503 = vand.u32 %v389, 1
    %v504 = vand.u32 %v390, 1
    %vm505 = vcmp.ne.s32.totalorder %v489, 0
    %vm506 = vcmp.ne.s32.totalorder %v490, 0
    %vm507 = vcmp.ne.s32.totalorder %v491, 0
    %vm508 = vcmp.ne.s32.totalorder %v492, 0
    %vm509 = vcmp.ne.s32.totalorder %v493, 0
    %vm510 = vcmp.ne.s32.totalorder %v494, 0
    %vm511 = vcmp.ne.s32.totalorder %v495, 0
    %vm512 = vcmp.ne.s32.totalorder %v496, 0
    %vm513 = vcmp.ne.s32.totalorder %v497, 0
    %vm514 = vcmp.ne.s32.totalorder %v498, 0
    %vm515 = vcmp.ne.s32.totalorder %v499, 0
    %vm516 = vcmp.ne.s32.totalorder %v500, 0
    %vm517 = vcmp.ne.s32.totalorder %v501, 0
    %vm518 = vcmp.ne.s32.totalorder %v502, 0
    %vm519 = vcmp.ne.s32.totalorder %v503, 0
    %vm520 = vcmp.ne.s32.totalorder %v504, 0
    %v521 = vsel %vm505, 1, 0
    %v522 = vsel %vm506, 1, 0
    %v523 = vsel %vm507, 1, 0
    %v524 = vsel %vm508, 1, 0
    %v525 = vsel %vm509, 1, 0
    %v526 = vsel %vm510, 1, 0
    %v527 = vsel %vm511, 1, 0
    %v528 = vsel %vm512, 1, 0
    %v529 = vsel %vm513, 1, 0
    %v530 = vsel %vm514, 1, 0
    %v531 = vsel %vm515, 1, 0
    %v532 = vsel %vm516, 1, 0
    %v533 = vsel %vm517, 1, 0
    %v534 = vsel %vm518, 1, 0
    %v535 = vsel %vm519, 1, 0
    %v536 = vsel %vm520, 1, 0
    %vm537 = vcmp.eq.s32.totalorder %v521, 1
    %vm538 = vcmp.eq.s32.totalorder %v522, 1
    %vm539 = vcmp.eq.s32.totalorder %v523, 1
    %vm540 = vcmp.eq.s32.totalorder %v524, 1
    %vm541 = vcmp.eq.s32.totalorder %v525, 1
    %vm542 = vcmp.eq.s32.totalorder %v526, 1
    %vm543 = vcmp.eq.s32.totalorder %v527, 1
    %vm544 = vcmp.eq.s32.totalorder %v528, 1
    %vm545 = vcmp.eq.s32.totalorder %v529, 1
    %vm546 = vcmp.eq.s32.totalorder %v530, 1
    %vm547 = vcmp.eq.s32.totalorder %v531, 1
    %vm548 = vcmp.eq.s32.totalorder %v532, 1
    %vm549 = vcmp.eq.s32.totalorder %v533, 1
    %vm550 = vcmp.eq.s32.totalorder %v534, 1
    %vm551 = vcmp.eq.s32.totalorder %v535, 1
    %vm552 = vcmp.eq.s32.totalorder %v536, 1
    %v553 = vsel %vm537, %v442, %v409
    %v554 = vsel %vm538, %v444, %v410
    %v555 = vsel %vm539, %v446, %v411
    %v556 = vsel %vm540, %v448, %v412
    %v557 = vsel %vm541, %v450, %v413
    %v558 = vsel %vm542, %v452, %v414
    %v559 = vsel %vm543, %v454, %v415
    %v560 = vsel %vm544, %v456, %v416
    %v561 = vsel %vm545, %v458, %v417
    %v562 = vsel %vm546, %v460, %v418
    %v563 = vsel %vm547, %v462, %v419
    %v564 = vsel %vm548, %v464, %v420
    %v565 = vsel %vm549, %v466, %v421
    %v566 = vsel %vm550, %v468, %v422
    %v567 = vsel %vm551, %v470, %v423
    %v568 = vsel %vm552, %v472, %v424
    %585 = vrot.lane.b32.xlu0 %v553, 126
    %v586 = vpop.permute.xlu0 %585
    %587 = vrot.lane.b32.xlu0 %v554, 126
    %v588 = vpop.permute.xlu0 %587
    %589 = vrot.lane.b32.xlu0 %v555, 126
    %v590 = vpop.permute.xlu0 %589
    %591 = vrot.lane.b32.xlu0 %v556, 126
    %v592 = vpop.permute.xlu0 %591
    %593 = vrot.lane.b32.xlu0 %v557, 126
    %v594 = vpop.permute.xlu0 %593
    %595 = vrot.lane.b32.xlu0 %v558, 126
    %v596 = vpop.permute.xlu0 %595
    %597 = vrot.lane.b32.xlu0 %v559, 126
    %v598 = vpop.permute.xlu0 %597
    %599 = vrot.lane.b32.xlu0 %v560, 126
    %v600 = vpop.permute.xlu0 %599
    %601 = vrot.lane.b32.xlu0 %v561, 126
    %v602 = vpop.permute.xlu0 %601
    %603 = vrot.lane.b32.xlu0 %v562, 126
    %v604 = vpop.permute.xlu0 %603
    %605 = vrot.lane.b32.xlu0 %v563, 126
    %v606 = vpop.permute.xlu0 %605
    %607 = vrot.lane.b32.xlu0 %v564, 126
    %v608 = vpop.permute.xlu0 %607
    %609 = vrot.lane.b32.xlu0 %v565, 126
    %v610 = vpop.permute.xlu0 %609
    %611 = vrot.lane.b32.xlu0 %v566, 126
    %v612 = vpop.permute.xlu0 %611
    %613 = vrot.lane.b32.xlu0 %v567, 126
    %v614 = vpop.permute.xlu0 %613
    %615 = vrot.lane.b32.xlu0 %v568, 126
    %v616 = vpop.permute.xlu0 %615
    %v633 = vand.u32 %v375, 2
    %v634 = vand.u32 %v376, 2
    %v635 = vand.u32 %v377, 2
    %v636 = vand.u32 %v378, 2
    %v637 = vand.u32 %v379, 2
    %v638 = vand.u32 %v380, 2
    %v639 = vand.u32 %v381, 2
    %v640 = vand.u32 %v382, 2
    %v641 = vand.u32 %v383, 2
    %v642 = vand.u32 %v384, 2
    %v643 = vand.u32 %v385, 2
    %v644 = vand.u32 %v386, 2
    %v645 = vand.u32 %v387, 2
    %v646 = vand.u32 %v388, 2
    %v647 = vand.u32 %v389, 2
    %v648 = vand.u32 %v390, 2
    %vm649 = vcmp.ne.s32.totalorder %v633, 0
    %vm650 = vcmp.ne.s32.totalorder %v634, 0
    %vm651 = vcmp.ne.s32.totalorder %v635, 0
    %vm652 = vcmp.ne.s32.totalorder %v636, 0
    %vm653 = vcmp.ne.s32.totalorder %v637, 0
    %vm654 = vcmp.ne.s32.totalorder %v638, 0
    %vm655 = vcmp.ne.s32.totalorder %v639, 0
    %vm656 = vcmp.ne.s32.totalorder %v640, 0
    %vm657 = vcmp.ne.s32.totalorder %v641, 0
    %vm658 = vcmp.ne.s32.totalorder %v642, 0
    %vm659 = vcmp.ne.s32.totalorder %v643, 0
    %vm660 = vcmp.ne.s32.totalorder %v644, 0
    %vm661 = vcmp.ne.s32.totalorder %v645, 0
    %vm662 = vcmp.ne.s32.totalorder %v646, 0
    %vm663 = vcmp.ne.s32.totalorder %v647, 0
    %vm664 = vcmp.ne.s32.totalorder %v648, 0
    %v665 = vsel %vm649, 1, 0
    %v666 = vsel %vm650, 1, 0
    %v667 = vsel %vm651, 1, 0
    %v668 = vsel %vm652, 1, 0
    %v669 = vsel %vm653, 1, 0
    %v670 = vsel %vm654, 1, 0
    %v671 = vsel %vm655, 1, 0
    %v672 = vsel %vm656, 1, 0
    %v673 = vsel %vm657, 1, 0
    %v674 = vsel %vm658, 1, 0
    %v675 = vsel %vm659, 1, 0
    %v676 = vsel %vm660, 1, 0
    %v677 = vsel %vm661, 1, 0
    %v678 = vsel %vm662, 1, 0
    %v679 = vsel %vm663, 1, 0
    %v680 = vsel %vm664, 1, 0
    %vm681 = vcmp.eq.s32.totalorder %v665, 1
    %vm682 = vcmp.eq.s32.totalorder %v666, 1
    %vm683 = vcmp.eq.s32.totalorder %v667, 1
    %vm684 = vcmp.eq.s32.totalorder %v668, 1
    %vm685 = vcmp.eq.s32.totalorder %v669, 1
    %vm686 = vcmp.eq.s32.totalorder %v670, 1
    %vm687 = vcmp.eq.s32.totalorder %v671, 1
    %vm688 = vcmp.eq.s32.totalorder %v672, 1
    %vm689 = vcmp.eq.s32.totalorder %v673, 1
    %vm690 = vcmp.eq.s32.totalorder %v674, 1
    %vm691 = vcmp.eq.s32.totalorder %v675, 1
    %vm692 = vcmp.eq.s32.totalorder %v676, 1
    %vm693 = vcmp.eq.s32.totalorder %v677, 1
    %vm694 = vcmp.eq.s32.totalorder %v678, 1
    %vm695 = vcmp.eq.s32.totalorder %v679, 1
    %vm696 = vcmp.eq.s32.totalorder %v680, 1
    %v697 = vsel %vm681, %v586, %v553
    %v698 = vsel %vm682, %v588, %v554
    %v699 = vsel %vm683, %v590, %v555
    %v700 = vsel %vm684, %v592, %v556
    %v701 = vsel %vm685, %v594, %v557
    %v702 = vsel %vm686, %v596, %v558
    %v703 = vsel %vm687, %v598, %v559
    %v704 = vsel %vm688, %v600, %v560
    %v705 = vsel %vm689, %v602, %v561
    %v706 = vsel %vm690, %v604, %v562
    %v707 = vsel %vm691, %v606, %v563
    %v708 = vsel %vm692, %v608, %v564
    %v709 = vsel %vm693, %v610, %v565
    %v710 = vsel %vm694, %v612, %v566
    %v711 = vsel %vm695, %v614, %v567
    %v712 = vsel %vm696, %v616, %v568
    %729 = vrot.lane.b32.xlu0 %v697, 124
    %v730 = vpop.permute.xlu0 %729
    %731 = vrot.lane.b32.xlu0 %v698, 124
    %v732 = vpop.permute.xlu0 %731
    %733 = vrot.lane.b32.xlu0 %v699, 124
    %v734 = vpop.permute.xlu0 %733
    %735 = vrot.lane.b32.xlu0 %v700, 124
    %v736 = vpop.permute.xlu0 %735
    %737 = vrot.lane.b32.xlu0 %v701, 124
    %v738 = vpop.permute.xlu0 %737
    %739 = vrot.lane.b32.xlu0 %v702, 124
    %v740 = vpop.permute.xlu0 %739
    %741 = vrot.lane.b32.xlu0 %v703, 124
    %v742 = vpop.permute.xlu0 %741
    %743 = vrot.lane.b32.xlu0 %v704, 124
    %v744 = vpop.permute.xlu0 %743
    %745 = vrot.lane.b32.xlu0 %v705, 124
    %v746 = vpop.permute.xlu0 %745
    %747 = vrot.lane.b32.xlu0 %v706, 124
    %v748 = vpop.permute.xlu0 %747
    %749 = vrot.lane.b32.xlu0 %v707, 124
    %v750 = vpop.permute.xlu0 %749
    %751 = vrot.lane.b32.xlu0 %v708, 124
    %v752 = vpop.permute.xlu0 %751
    %753 = vrot.lane.b32.xlu0 %v709, 124
    %v754 = vpop.permute.xlu0 %753
    %755 = vrot.lane.b32.xlu0 %v710, 124
    %v756 = vpop.permute.xlu0 %755
    %757 = vrot.lane.b32.xlu0 %v711, 124
    %v758 = vpop.permute.xlu0 %757
    %759 = vrot.lane.b32.xlu0 %v712, 124
    %v760 = vpop.permute.xlu0 %759
    %v777 = vand.u32 %v375, 4
    %v778 = vand.u32 %v376, 4
    %v779 = vand.u32 %v377, 4
    %v780 = vand.u32 %v378, 4
    %v781 = vand.u32 %v379, 4
    %v782 = vand.u32 %v380, 4
    %v783 = vand.u32 %v381, 4
    %v784 = vand.u32 %v382, 4
    %v785 = vand.u32 %v383, 4
    %v786 = vand.u32 %v384, 4
    %v787 = vand.u32 %v385, 4
    %v788 = vand.u32 %v386, 4
    %v789 = vand.u32 %v387, 4
    %v790 = vand.u32 %v388, 4
    %v791 = vand.u32 %v389, 4
    %v792 = vand.u32 %v390, 4
    %vm793 = vcmp.ne.s32.totalorder %v777, 0
    %vm794 = vcmp.ne.s32.totalorder %v778, 0
    %vm795 = vcmp.ne.s32.totalorder %v779, 0
    %vm796 = vcmp.ne.s32.totalorder %v780, 0
    %vm797 = vcmp.ne.s32.totalorder %v781, 0
    %vm798 = vcmp.ne.s32.totalorder %v782, 0
    %vm799 = vcmp.ne.s32.totalorder %v783, 0
    %vm800 = vcmp.ne.s32.totalorder %v784, 0
    %vm801 = vcmp.ne.s32.totalorder %v785, 0
    %vm802 = vcmp.ne.s32.totalorder %v786, 0
    %vm803 = vcmp.ne.s32.totalorder %v787, 0
    %vm804 = vcmp.ne.s32.totalorder %v788, 0
    %vm805 = vcmp.ne.s32.totalorder %v789, 0
    %vm806 = vcmp.ne.s32.totalorder %v790, 0
    %vm807 = vcmp.ne.s32.totalorder %v791, 0
    %vm808 = vcmp.ne.s32.totalorder %v792, 0
    %v809 = vsel %vm793, 1, 0
    %v810 = vsel %vm794, 1, 0
    %v811 = vsel %vm795, 1, 0
    %v812 = vsel %vm796, 1, 0
    %v813 = vsel %vm797, 1, 0
    %v814 = vsel %vm798, 1, 0
    %v815 = vsel %vm799, 1, 0
    %v816 = vsel %vm800, 1, 0
    %v817 = vsel %vm801, 1, 0
    %v818 = vsel %vm802, 1, 0
    %v819 = vsel %vm803, 1, 0
    %v820 = vsel %vm804, 1, 0
    %v821 = vsel %vm805, 1, 0
    %v822 = vsel %vm806, 1, 0
    %v823 = vsel %vm807, 1, 0
    %v824 = vsel %vm808, 1, 0
    %vm825 = vcmp.eq.s32.totalorder %v809, 1
    %vm826 = vcmp.eq.s32.totalorder %v810, 1
    %vm827 = vcmp.eq.s32.totalorder %v811, 1
    %vm828 = vcmp.eq.s32.totalorder %v812, 1
    %vm829 = vcmp.eq.s32.totalorder %v813, 1
    %vm830 = vcmp.eq.s32.totalorder %v814, 1
    %vm831 = vcmp.eq.s32.totalorder %v815, 1
    %vm832 = vcmp.eq.s32.totalorder %v816, 1
    %vm833 = vcmp.eq.s32.totalorder %v817, 1
    %vm834 = vcmp.eq.s32.totalorder %v818, 1
    %vm835 = vcmp.eq.s32.totalorder %v819, 1
    %vm836 = vcmp.eq.s32.totalorder %v820, 1
    %vm837 = vcmp.eq.s32.totalorder %v821, 1
    %vm838 = vcmp.eq.s32.totalorder %v822, 1
    %vm839 = vcmp.eq.s32.totalorder %v823, 1
    %vm840 = vcmp.eq.s32.totalorder %v824, 1
    %v841 = vsel %vm825, %v730, %v697
    %v842 = vsel %vm826, %v732, %v698
    %v843 = vsel %vm827, %v734, %v699
    %v844 = vsel %vm828, %v736, %v700
    %v845 = vsel %vm829, %v738, %v701
    %v846 = vsel %vm830, %v740, %v702
    %v847 = vsel %vm831, %v742, %v703
    %v848 = vsel %vm832, %v744, %v704
    %v849 = vsel %vm833, %v746, %v705
    %v850 = vsel %vm834, %v748, %v706
    %v851 = vsel %vm835, %v750, %v707
    %v852 = vsel %vm836, %v752, %v708
    %v853 = vsel %vm837, %v754, %v709
    %v854 = vsel %vm838, %v756, %v710
    %v855 = vsel %vm839, %v758, %v711
    %v856 = vsel %vm840, %v760, %v712
    %873 = vrot.lane.b32.xlu0 %v841, 120
    %v874 = vpop.permute.xlu0 %873
    %875 = vrot.lane.b32.xlu0 %v842, 120
    %v876 = vpop.permute.xlu0 %875
    %877 = vrot.lane.b32.xlu0 %v843, 120
    %v878 = vpop.permute.xlu0 %877
    %879 = vrot.lane.b32.xlu0 %v844, 120
    %v880 = vpop.permute.xlu0 %879
    %881 = vrot.lane.b32.xlu0 %v845, 120
    %v882 = vpop.permute.xlu0 %881
    %883 = vrot.lane.b32.xlu0 %v846, 120
    %v884 = vpop.permute.xlu0 %883
    %885 = vrot.lane.b32.xlu0 %v847, 120
    %v886 = vpop.permute.xlu0 %885
    %887 = vrot.lane.b32.xlu0 %v848, 120
    %v888 = vpop.permute.xlu0 %887
    %889 = vrot.lane.b32.xlu0 %v849, 120
    %v890 = vpop.permute.xlu0 %889
    %891 = vrot.lane.b32.xlu0 %v850, 120
    %v892 = vpop.permute.xlu0 %891
    %893 = vrot.lane.b32.xlu0 %v851, 120
    %v894 = vpop.permute.xlu0 %893
    %895 = vrot.lane.b32.xlu0 %v852, 120
    %v896 = vpop.permute.xlu0 %895
    %897 = vrot.lane.b32.xlu0 %v853, 120
    %v898 = vpop.permute.xlu0 %897
    %899 = vrot.lane.b32.xlu0 %v854, 120
    %v900 = vpop.permute.xlu0 %899
    %901 = vrot.lane.b32.xlu0 %v855, 120
    %v902 = vpop.permute.xlu0 %901
    %903 = vrot.lane.b32.xlu0 %v856, 120
    %v904 = vpop.permute.xlu0 %903
    %v921 = vand.u32 %v375, 8
    %v922 = vand.u32 %v376, 8
    %v923 = vand.u32 %v377, 8
    %v924 = vand.u32 %v378, 8
    %v925 = vand.u32 %v379, 8
    %v926 = vand.u32 %v380, 8
    %v927 = vand.u32 %v381, 8
    %v928 = vand.u32 %v382, 8
    %v929 = vand.u32 %v383, 8
    %v930 = vand.u32 %v384, 8
    %v931 = vand.u32 %v385, 8
    %v932 = vand.u32 %v386, 8
    %v933 = vand.u32 %v387, 8
    %v934 = vand.u32 %v388, 8
    %v935 = vand.u32 %v389, 8
    %v936 = vand.u32 %v390, 8
    %vm937 = vcmp.ne.s32.totalorder %v921, 0
    %vm938 = vcmp.ne.s32.totalorder %v922, 0
    %vm939 = vcmp.ne.s32.totalorder %v923, 0
    %vm940 = vcmp.ne.s32.totalorder %v924, 0
    %vm941 = vcmp.ne.s32.totalorder %v925, 0
    %vm942 = vcmp.ne.s32.totalorder %v926, 0
    %vm943 = vcmp.ne.s32.totalorder %v927, 0
    %vm944 = vcmp.ne.s32.totalorder %v928, 0
    %vm945 = vcmp.ne.s32.totalorder %v929, 0
    %vm946 = vcmp.ne.s32.totalorder %v930, 0
    %vm947 = vcmp.ne.s32.totalorder %v931, 0
    %vm948 = vcmp.ne.s32.totalorder %v932, 0
    %vm949 = vcmp.ne.s32.totalorder %v933, 0
    %vm950 = vcmp.ne.s32.totalorder %v934, 0
    %vm951 = vcmp.ne.s32.totalorder %v935, 0
    %vm952 = vcmp.ne.s32.totalorder %v936, 0
    %v953 = vsel %vm937, 1, 0
    %v954 = vsel %vm938, 1, 0
    %v955 = vsel %vm939, 1, 0
    %v956 = vsel %vm940, 1, 0
    %v957 = vsel %vm941, 1, 0
    %v958 = vsel %vm942, 1, 0
    %v959 = vsel %vm943, 1, 0
    %v960 = vsel %vm944, 1, 0
    %v961 = vsel %vm945, 1, 0
    %v962 = vsel %vm946, 1, 0
    %v963 = vsel %vm947, 1, 0
    %v964 = vsel %vm948, 1, 0
    %v965 = vsel %vm949, 1, 0
    %v966 = vsel %vm950, 1, 0
    %v967 = vsel %vm951, 1, 0
    %v968 = vsel %vm952, 1, 0
    %vm969 = vcmp.eq.s32.totalorder %v953, 1
    %vm970 = vcmp.eq.s32.totalorder %v954, 1
    %vm971 = vcmp.eq.s32.totalorder %v955, 1
    %vm972 = vcmp.eq.s32.totalorder %v956, 1
    %vm973 = vcmp.eq.s32.totalorder %v957, 1
    %vm974 = vcmp.eq.s32.totalorder %v958, 1
    %vm975 = vcmp.eq.s32.totalorder %v959, 1
    %vm976 = vcmp.eq.s32.totalorder %v960, 1
    %vm977 = vcmp.eq.s32.totalorder %v961, 1
    %vm978 = vcmp.eq.s32.totalorder %v962, 1
    %vm979 = vcmp.eq.s32.totalorder %v963, 1
    %vm980 = vcmp.eq.s32.totalorder %v964, 1
    %vm981 = vcmp.eq.s32.totalorder %v965, 1
    %vm982 = vcmp.eq.s32.totalorder %v966, 1
    %vm983 = vcmp.eq.s32.totalorder %v967, 1
    %vm984 = vcmp.eq.s32.totalorder %v968, 1
    %v985 = vsel %vm969, %v874, %v841
    %v986 = vsel %vm970, %v876, %v842
    %v987 = vsel %vm971, %v878, %v843
    %v988 = vsel %vm972, %v880, %v844
    %v989 = vsel %vm973, %v882, %v845
    %v990 = vsel %vm974, %v884, %v846
    %v991 = vsel %vm975, %v886, %v847
    %v992 = vsel %vm976, %v888, %v848
    %v993 = vsel %vm977, %v890, %v849
    %v994 = vsel %vm978, %v892, %v850
    %v995 = vsel %vm979, %v894, %v851
    %v996 = vsel %vm980, %v896, %v852
    %v997 = vsel %vm981, %v898, %v853
    %v998 = vsel %vm982, %v900, %v854
    %v999 = vsel %vm983, %v902, %v855
    %v1000 = vsel %vm984, %v904, %v856
    %1017 = vrot.lane.b32.xlu0 %v985, 112
    %v1018 = vpop.permute.xlu0 %1017
    %1019 = vrot.lane.b32.xlu0 %v986, 112
    %v1020 = vpop.permute.xlu0 %1019
    %1021 = vrot.lane.b32.xlu0 %v987, 112
    %v1022 = vpop.permute.xlu0 %1021
    %1023 = vrot.lane.b32.xlu0 %v988, 112
    %v1024 = vpop.permute.xlu0 %1023
    %1025 = vrot.lane.b32.xlu0 %v989, 112
    %v1026 = vpop.permute.xlu0 %1025
    %1027 = vrot.lane.b32.xlu0 %v990, 112
    %v1028 = vpop.permute.xlu0 %1027
    %1029 = vrot.lane.b32.xlu0 %v991, 112
    %v1030 = vpop.permute.xlu0 %1029
    %1031 = vrot.lane.b32.xlu0 %v992, 112
    %v1032 = vpop.permute.xlu0 %1031
    %1033 = vrot.lane.b32.xlu0 %v993, 112
    %v1034 = vpop.permute.xlu0 %1033
    %1035 = vrot.lane.b32.xlu0 %v994, 112
    %v1036 = vpop.permute.xlu0 %1035
    %1037 = vrot.lane.b32.xlu0 %v995, 112
    %v1038 = vpop.permute.xlu0 %1037
    %1039 = vrot.lane.b32.xlu0 %v996, 112
    %v1040 = vpop.permute.xlu0 %1039
    %1041 = vrot.lane.b32.xlu0 %v997, 112
    %v1042 = vpop.permute.xlu0 %1041
    %1043 = vrot.lane.b32.xlu0 %v998, 112
    %v1044 = vpop.permute.xlu0 %1043
    %1045 = vrot.lane.b32.xlu0 %v999, 112
    %v1046 = vpop.permute.xlu0 %1045
    %1047 = vrot.lane.b32.xlu0 %v1000, 112
    %v1048 = vpop.permute.xlu0 %1047
    %v1065 = vand.u32 %v375, 16
    %v1066 = vand.u32 %v376, 16
    %v1067 = vand.u32 %v377, 16
    %v1068 = vand.u32 %v378, 16
    %v1069 = vand.u32 %v379, 16
    %v1070 = vand.u32 %v380, 16
    %v1071 = vand.u32 %v381, 16
    %v1072 = vand.u32 %v382, 16
    %v1073 = vand.u32 %v383, 16
    %v1074 = vand.u32 %v384, 16
    %v1075 = vand.u32 %v385, 16
    %v1076 = vand.u32 %v386, 16
    %v1077 = vand.u32 %v387, 16
    %v1078 = vand.u32 %v388, 16
    %v1079 = vand.u32 %v389, 16
    %v1080 = vand.u32 %v390, 16
    %vm1081 = vcmp.ne.s32.totalorder %v1065, 0
    %vm1082 = vcmp.ne.s32.totalorder %v1066, 0
    %vm1083 = vcmp.ne.s32.totalorder %v1067, 0
    %vm1084 = vcmp.ne.s32.totalorder %v1068, 0
    %vm1085 = vcmp.ne.s32.totalorder %v1069, 0
    %vm1086 = vcmp.ne.s32.totalorder %v1070, 0
    %vm1087 = vcmp.ne.s32.totalorder %v1071, 0
    %vm1088 = vcmp.ne.s32.totalorder %v1072, 0
    %vm1089 = vcmp.ne.s32.totalorder %v1073, 0
    %vm1090 = vcmp.ne.s32.totalorder %v1074, 0
    %vm1091 = vcmp.ne.s32.totalorder %v1075, 0
    %vm1092 = vcmp.ne.s32.totalorder %v1076, 0
    %vm1093 = vcmp.ne.s32.totalorder %v1077, 0
    %vm1094 = vcmp.ne.s32.totalorder %v1078, 0
    %vm1095 = vcmp.ne.s32.totalorder %v1079, 0
    %vm1096 = vcmp.ne.s32.totalorder %v1080, 0
    %v1097 = vsel %vm1081, 1, 0
    %v1098 = vsel %vm1082, 1, 0
    %v1099 = vsel %vm1083, 1, 0
    %v1100 = vsel %vm1084, 1, 0
    %v1101 = vsel %vm1085, 1, 0
    %v1102 = vsel %vm1086, 1, 0
    %v1103 = vsel %vm1087, 1, 0
    %v1104 = vsel %vm1088, 1, 0
    %v1105 = vsel %vm1089, 1, 0
    %v1106 = vsel %vm1090, 1, 0
    %v1107 = vsel %vm1091, 1, 0
    %v1108 = vsel %vm1092, 1, 0
    %v1109 = vsel %vm1093, 1, 0
    %v1110 = vsel %vm1094, 1, 0
    %v1111 = vsel %vm1095, 1, 0
    %v1112 = vsel %vm1096, 1, 0
    %vm1113 = vcmp.eq.s32.totalorder %v1097, 1
    %vm1114 = vcmp.eq.s32.totalorder %v1098, 1
    %vm1115 = vcmp.eq.s32.totalorder %v1099, 1
    %vm1116 = vcmp.eq.s32.totalorder %v1100, 1
    %vm1117 = vcmp.eq.s32.totalorder %v1101, 1
    %vm1118 = vcmp.eq.s32.totalorder %v1102, 1
    %vm1119 = vcmp.eq.s32.totalorder %v1103, 1
    %vm1120 = vcmp.eq.s32.totalorder %v1104, 1
    %vm1121 = vcmp.eq.s32.totalorder %v1105, 1
    %vm1122 = vcmp.eq.s32.totalorder %v1106, 1
    %vm1123 = vcmp.eq.s32.totalorder %v1107, 1
    %vm1124 = vcmp.eq.s32.totalorder %v1108, 1
    %vm1125 = vcmp.eq.s32.totalorder %v1109, 1
    %vm1126 = vcmp.eq.s32.totalorder %v1110, 1
    %vm1127 = vcmp.eq.s32.totalorder %v1111, 1
    %vm1128 = vcmp.eq.s32.totalorder %v1112, 1
    %v1129 = vsel %vm1113, %v1018, %v985
    %v1130 = vsel %vm1114, %v1020, %v986
    %v1131 = vsel %vm1115, %v1022, %v987
    %v1132 = vsel %vm1116, %v1024, %v988
    %v1133 = vsel %vm1117, %v1026, %v989
    %v1134 = vsel %vm1118, %v1028, %v990
    %v1135 = vsel %vm1119, %v1030, %v991
    %v1136 = vsel %vm1120, %v1032, %v992
    %v1137 = vsel %vm1121, %v1034, %v993
    %v1138 = vsel %vm1122, %v1036, %v994
    %v1139 = vsel %vm1123, %v1038, %v995
    %v1140 = vsel %vm1124, %v1040, %v996
    %v1141 = vsel %vm1125, %v1042, %v997
    %v1142 = vsel %vm1126, %v1044, %v998
    %v1143 = vsel %vm1127, %v1046, %v999
    %v1144 = vsel %vm1128, %v1048, %v1000
    %1161 = vrot.lane.b32.xlu0 %v1129, 96
    %v1162 = vpop.permute.xlu0 %1161
    %1163 = vrot.lane.b32.xlu0 %v1130, 96
    %v1164 = vpop.permute.xlu0 %1163
    %1165 = vrot.lane.b32.xlu0 %v1131, 96
    %v1166 = vpop.permute.xlu0 %1165
    %1167 = vrot.lane.b32.xlu0 %v1132, 96
    %v1168 = vpop.permute.xlu0 %1167
    %1169 = vrot.lane.b32.xlu0 %v1133, 96
    %v1170 = vpop.permute.xlu0 %1169
    %1171 = vrot.lane.b32.xlu0 %v1134, 96
    %v1172 = vpop.permute.xlu0 %1171
    %1173 = vrot.lane.b32.xlu0 %v1135, 96
    %v1174 = vpop.permute.xlu0 %1173
    %1175 = vrot.lane.b32.xlu0 %v1136, 96
    %v1176 = vpop.permute.xlu0 %1175
    %1177 = vrot.lane.b32.xlu0 %v1137, 96
    %v1178 = vpop.permute.xlu0 %1177
    %1179 = vrot.lane.b32.xlu0 %v1138, 96
    %v1180 = vpop.permute.xlu0 %1179
    %1181 = vrot.lane.b32.xlu0 %v1139, 96
    %v1182 = vpop.permute.xlu0 %1181
    %1183 = vrot.lane.b32.xlu0 %v1140, 96
    %v1184 = vpop.permute.xlu0 %1183
    %1185 = vrot.lane.b32.xlu0 %v1141, 96
    %v1186 = vpop.permute.xlu0 %1185
    %1187 = vrot.lane.b32.xlu0 %v1142, 96
    %v1188 = vpop.permute.xlu0 %1187
    %1189 = vrot.lane.b32.xlu0 %v1143, 96
    %v1190 = vpop.permute.xlu0 %1189
    %1191 = vrot.lane.b32.xlu0 %v1144, 96
    %v1192 = vpop.permute.xlu0 %1191
    %v1209 = vand.u32 %v375, 32
    %v1210 = vand.u32 %v376, 32
    %v1211 = vand.u32 %v377, 32
    %v1212 = vand.u32 %v378, 32
    %v1213 = vand.u32 %v379, 32
    %v1214 = vand.u32 %v380, 32
    %v1215 = vand.u32 %v381, 32
    %v1216 = vand.u32 %v382, 32
    %v1217 = vand.u32 %v383, 32
    %v1218 = vand.u32 %v384, 32
    %v1219 = vand.u32 %v385, 32
    %v1220 = vand.u32 %v386, 32
    %v1221 = vand.u32 %v387, 32
    %v1222 = vand.u32 %v388, 32
    %v1223 = vand.u32 %v389, 32
    %v1224 = vand.u32 %v390, 32
    %vm1225 = vcmp.ne.s32.totalorder %v1209, 0
    %vm1226 = vcmp.ne.s32.totalorder %v1210, 0
    %vm1227 = vcmp.ne.s32.totalorder %v1211, 0
    %vm1228 = vcmp.ne.s32.totalorder %v1212, 0
    %vm1229 = vcmp.ne.s32.totalorder %v1213, 0
    %vm1230 = vcmp.ne.s32.totalorder %v1214, 0
    %vm1231 = vcmp.ne.s32.totalorder %v1215, 0
    %vm1232 = vcmp.ne.s32.totalorder %v1216, 0
    %vm1233 = vcmp.ne.s32.totalorder %v1217, 0
    %vm1234 = vcmp.ne.s32.totalorder %v1218, 0
    %vm1235 = vcmp.ne.s32.totalorder %v1219, 0
    %vm1236 = vcmp.ne.s32.totalorder %v1220, 0
    %vm1237 = vcmp.ne.s32.totalorder %v1221, 0
    %vm1238 = vcmp.ne.s32.totalorder %v1222, 0
    %vm1239 = vcmp.ne.s32.totalorder %v1223, 0
    %vm1240 = vcmp.ne.s32.totalorder %v1224, 0
    %v1241 = vsel %vm1225, 1, 0
    %v1242 = vsel %vm1226, 1, 0
    %v1243 = vsel %vm1227, 1, 0
    %v1244 = vsel %vm1228, 1, 0
    %v1245 = vsel %vm1229, 1, 0
    %v1246 = vsel %vm1230, 1, 0
    %v1247 = vsel %vm1231, 1, 0
    %v1248 = vsel %vm1232, 1, 0
    %v1249 = vsel %vm1233, 1, 0
    %v1250 = vsel %vm1234, 1, 0
    %v1251 = vsel %vm1235, 1, 0
    %v1252 = vsel %vm1236, 1, 0
    %v1253 = vsel %vm1237, 1, 0
    %v1254 = vsel %vm1238, 1, 0
    %v1255 = vsel %vm1239, 1, 0
    %v1256 = vsel %vm1240, 1, 0
    %vm1257 = vcmp.eq.s32.totalorder %v1241, 1
    %vm1258 = vcmp.eq.s32.totalorder %v1242, 1
    %vm1259 = vcmp.eq.s32.totalorder %v1243, 1
    %vm1260 = vcmp.eq.s32.totalorder %v1244, 1
    %vm1261 = vcmp.eq.s32.totalorder %v1245, 1
    %vm1262 = vcmp.eq.s32.totalorder %v1246, 1
    %vm1263 = vcmp.eq.s32.totalorder %v1247, 1
    %vm1264 = vcmp.eq.s32.totalorder %v1248, 1
    %vm1265 = vcmp.eq.s32.totalorder %v1249, 1
    %vm1266 = vcmp.eq.s32.totalorder %v1250, 1
    %vm1267 = vcmp.eq.s32.totalorder %v1251, 1
    %vm1268 = vcmp.eq.s32.totalorder %v1252, 1
    %vm1269 = vcmp.eq.s32.totalorder %v1253, 1
    %vm1270 = vcmp.eq.s32.totalorder %v1254, 1
    %vm1271 = vcmp.eq.s32.totalorder %v1255, 1
    %vm1272 = vcmp.eq.s32.totalorder %v1256, 1
    %v1273 = vsel %vm1257, %v1162, %v1129
    %v1274 = vsel %vm1258, %v1164, %v1130
    %v1275 = vsel %vm1259, %v1166, %v1131
    %v1276 = vsel %vm1260, %v1168, %v1132
    %v1277 = vsel %vm1261, %v1170, %v1133
    %v1278 = vsel %vm1262, %v1172, %v1134
    %v1279 = vsel %vm1263, %v1174, %v1135
    %v1280 = vsel %vm1264, %v1176, %v1136
    %v1281 = vsel %vm1265, %v1178, %v1137
    %v1282 = vsel %vm1266, %v1180, %v1138
    %v1283 = vsel %vm1267, %v1182, %v1139
    %v1284 = vsel %vm1268, %v1184, %v1140
    %v1285 = vsel %vm1269, %v1186, %v1141
    %v1286 = vsel %vm1270, %v1188, %v1142
    %v1287 = vsel %vm1271, %v1190, %v1143
    %v1288 = vsel %vm1272, %v1192, %v1144
    %1305 = vrot.lane.b32.xlu0 %v1273, 64
    %v1306 = vpop.permute.xlu0 %1305
    %1307 = vrot.lane.b32.xlu0 %v1274, 64
    %v1308 = vpop.permute.xlu0 %1307
    %1309 = vrot.lane.b32.xlu0 %v1275, 64
    %v1310 = vpop.permute.xlu0 %1309
    %1311 = vrot.lane.b32.xlu0 %v1276, 64
    %v1312 = vpop.permute.xlu0 %1311
    %1313 = vrot.lane.b32.xlu0 %v1277, 64
    %v1314 = vpop.permute.xlu0 %1313
    %1315 = vrot.lane.b32.xlu0 %v1278, 64
    %v1316 = vpop.permute.xlu0 %1315
    %1317 = vrot.lane.b32.xlu0 %v1279, 64
    %v1318 = vpop.permute.xlu0 %1317
    %1319 = vrot.lane.b32.xlu0 %v1280, 64
    %v1320 = vpop.permute.xlu0 %1319
    %1321 = vrot.lane.b32.xlu0 %v1281, 64
    %v1322 = vpop.permute.xlu0 %1321
    %1323 = vrot.lane.b32.xlu0 %v1282, 64
    %v1324 = vpop.permute.xlu0 %1323
    %1325 = vrot.lane.b32.xlu0 %v1283, 64
    %v1326 = vpop.permute.xlu0 %1325
    %1327 = vrot.lane.b32.xlu0 %v1284, 64
    %v1328 = vpop.permute.xlu0 %1327
    %1329 = vrot.lane.b32.xlu0 %v1285, 64
    %v1330 = vpop.permute.xlu0 %1329
    %1331 = vrot.lane.b32.xlu0 %v1286, 64
    %v1332 = vpop.permute.xlu0 %1331
    %1333 = vrot.lane.b32.xlu0 %v1287, 64
    %v1334 = vpop.permute.xlu0 %1333
    %1335 = vrot.lane.b32.xlu0 %v1288, 64
    %v1336 = vpop.permute.xlu0 %1335
    %v1353 = vand.u32 %v375, 64
    %v1354 = vand.u32 %v376, 64
    %v1355 = vand.u32 %v377, 64
    %v1356 = vand.u32 %v378, 64
    %v1357 = vand.u32 %v379, 64
    %v1358 = vand.u32 %v380, 64
    %v1359 = vand.u32 %v381, 64
    %v1360 = vand.u32 %v382, 64
    %v1361 = vand.u32 %v383, 64
    %v1362 = vand.u32 %v384, 64
    %v1363 = vand.u32 %v385, 64
    %v1364 = vand.u32 %v386, 64
    %v1365 = vand.u32 %v387, 64
    %v1366 = vand.u32 %v388, 64
    %v1367 = vand.u32 %v389, 64
    %v1368 = vand.u32 %v390, 64
    %vm1369 = vcmp.ne.s32.totalorder %v1353, 0
    %vm1370 = vcmp.ne.s32.totalorder %v1354, 0
    %vm1371 = vcmp.ne.s32.totalorder %v1355, 0
    %vm1372 = vcmp.ne.s32.totalorder %v1356, 0
    %vm1373 = vcmp.ne.s32.totalorder %v1357, 0
    %vm1374 = vcmp.ne.s32.totalorder %v1358, 0
    %vm1375 = vcmp.ne.s32.totalorder %v1359, 0
    %vm1376 = vcmp.ne.s32.totalorder %v1360, 0
    %vm1377 = vcmp.ne.s32.totalorder %v1361, 0
    %vm1378 = vcmp.ne.s32.totalorder %v1362, 0
    %vm1379 = vcmp.ne.s32.totalorder %v1363, 0
    %vm1380 = vcmp.ne.s32.totalorder %v1364, 0
    %vm1381 = vcmp.ne.s32.totalorder %v1365, 0
    %vm1382 = vcmp.ne.s32.totalorder %v1366, 0
    %vm1383 = vcmp.ne.s32.totalorder %v1367, 0
    %vm1384 = vcmp.ne.s32.totalorder %v1368, 0
    %v1385 = vsel %vm1369, 1, 0
    %v1386 = vsel %vm1370, 1, 0
    %v1387 = vsel %vm1371, 1, 0
    %v1388 = vsel %vm1372, 1, 0
    %v1389 = vsel %vm1373, 1, 0
    %v1390 = vsel %vm1374, 1, 0
    %v1391 = vsel %vm1375, 1, 0
    %v1392 = vsel %vm1376, 1, 0
    %v1393 = vsel %vm1377, 1, 0
    %v1394 = vsel %vm1378, 1, 0
    %v1395 = vsel %vm1379, 1, 0
    %v1396 = vsel %vm1380, 1, 0
    %v1397 = vsel %vm1381, 1, 0
    %v1398 = vsel %vm1382, 1, 0
    %v1399 = vsel %vm1383, 1, 0
    %v1400 = vsel %vm1384, 1, 0
    %vm1401 = vcmp.eq.s32.totalorder %v1385, 1
    %vm1402 = vcmp.eq.s32.totalorder %v1386, 1
    %vm1403 = vcmp.eq.s32.totalorder %v1387, 1
    %vm1404 = vcmp.eq.s32.totalorder %v1388, 1
    %vm1405 = vcmp.eq.s32.totalorder %v1389, 1
    %vm1406 = vcmp.eq.s32.totalorder %v1390, 1
    %vm1407 = vcmp.eq.s32.totalorder %v1391, 1
    %vm1408 = vcmp.eq.s32.totalorder %v1392, 1
    %vm1409 = vcmp.eq.s32.totalorder %v1393, 1
    %vm1410 = vcmp.eq.s32.totalorder %v1394, 1
    %vm1411 = vcmp.eq.s32.totalorder %v1395, 1
    %vm1412 = vcmp.eq.s32.totalorder %v1396, 1
    %vm1413 = vcmp.eq.s32.totalorder %v1397, 1
    %vm1414 = vcmp.eq.s32.totalorder %v1398, 1
    %vm1415 = vcmp.eq.s32.totalorder %v1399, 1
    %vm1416 = vcmp.eq.s32.totalorder %v1400, 1
    %v1417 = vsel %vm1401, %v1306, %v1273
    %v1418 = vsel %vm1402, %v1308, %v1274
    %v1419 = vsel %vm1403, %v1310, %v1275
    %v1420 = vsel %vm1404, %v1312, %v1276
    %v1421 = vsel %vm1405, %v1314, %v1277
    %v1422 = vsel %vm1406, %v1316, %v1278
    %v1423 = vsel %vm1407, %v1318, %v1279
    %v1424 = vsel %vm1408, %v1320, %v1280
    %v1425 = vsel %vm1409, %v1322, %v1281
    %v1426 = vsel %vm1410, %v1324, %v1282
    %v1427 = vsel %vm1411, %v1326, %v1283
    %v1428 = vsel %vm1412, %v1328, %v1284
    %v1429 = vsel %vm1413, %v1330, %v1285
    %v1430 = vsel %vm1414, %v1332, %v1286
    %v1431 = vsel %vm1415, %v1334, %v1287
    %v1432 = vsel %vm1416, %v1336, %v1288
    %v1433 = vadd.f32 %v1417, %v1418
    %v1434 = vadd.f32 %v1433, %v1419
    %v1435 = vadd.f32 %v1434, %v1420
    %v1436 = vadd.f32 %v1435, %v1421
    %v1437 = vadd.f32 %v1436, %v1422
    %v1438 = vadd.f32 %v1437, %v1423
    %v1439 = vadd.f32 %v1438, %v1424
    %v1440 = vadd.f32 %v1439, %v1425
    %v1441 = vadd.f32 %v1440, %v1426
    %v1442 = vadd.f32 %v1441, %v1427
    %v1443 = vadd.f32 %v1442, %v1428
    %v1444 = vadd.f32 %v1443, %v1429
    %v1445 = vadd.f32 %v1444, %v1430
    %v1446 = vadd.f32 %v1445, %v1431
    %v1447 = vadd.f32 %v1446, %v1432
    %v1448 = vrot.slane %v1447, 4
    %v1449 = vadd.f32 %v1447, %v1448
    %v1450 = vrot.slane %v1449, 2
    %v1451 = vadd.f32 %v1449, %v1450
    %v1452 = vrot.slane %v1451, 1
    %v1453 = vadd.f32 %v1451, %v1452
    %v1454 = vld [vmem:[#allocation6] sm:$0xff]
    %v1455 = vadd.f32 %v1454, %v1453
    %1456 = vst [vmem:[#allocation6] sm:$0xff] %v1455
    %1457 = vst [vmem:[#allocation2] sm:$0xff] %v52
    %1458 = vst [vmem:[#allocation2 + $0x8] sm:$0xff] %v53
    %1459 = vst [vmem:[#allocation2 + $0x10] sm:$0xff] %v54
    %1460 = vst [vmem:[#allocation2 + $0x18] sm:$0xff] %v55
    %1461 = vst [vmem:[#allocation2 + $0x20] sm:$0xff] %v56
    %1462 = vst [vmem:[#allocation2 + $0x28] sm:$0xff] %v57
    %1463 = vst [vmem:[#allocation2 + $0x30] sm:$0xff] %v58
    %1464 = vst [vmem:[#allocation2 + $0x38] sm:$0xff] %v59
    %1465 = vst [vmem:[#allocation2 + $0x40] sm:$0xff] %v60
    %1466 = vst [vmem:[#allocation2 + $0x48] sm:$0xff] %v61
    %1467 = vst [vmem:[#allocation2 + $0x50] sm:$0xff] %v62
    %1468 = vst [vmem:[#allocation2 + $0x58] sm:$0xff] %v63
    %1469 = vst [vmem:[#allocation2 + $0x60] sm:$0xff] %v64
    %1470 = vst [vmem:[#allocation2 + $0x68] sm:$0xff] %v65
    %1471 = vst [vmem:[#allocation2 + $0x70] sm:$0xff] %v66
    %1472 = vst [vmem:[#allocation2 + $0x78] sm:$0xff] %v67
    // Predicated region
    $region22: #{tpu_custom_call.1} parent=1 // pred_check
      _
    $region23: #{tpu_custom_call.1} parent=1 // pred_check_branch
      %1474 = sbr.rel (%p28) target = $region25
    $region24: #{tpu_custom_call.1} parent=1 // pred_region
      %v1475 = vld [vmem:[#allocation6] sm:$0xff]
      %v1476 = vld [vmem:[%s1] sm:$0x1]
      %v1478 = vlaneseq
      %v1479 = vshrl.u32 %v1478, 7
      %v1480 = vsub.s32 0, %v1479
      %v1481 = vrot.slane %v1476, %v1480
      %v1483 = vmul.f32 %v1475, %v1481
      %1484 = vst [vmem:[#allocation6] sm:$0xff] %v1483
    $region25: #{tpu_custom_call.1} parent=1 // pred_fallthru
      _
    // Predicated region
    $region26: #{tpu_custom_call.1} parent=1 // pred_check
      _
    $region27: #{tpu_custom_call.1} parent=1 // pred_check_branch
      %1486 = sbr.rel (0) target = $region29
    $region28: #{tpu_custom_call.1} parent=1 // pred_region
      %s1488 = ssub.s32 128, 128
      %1489 = vsyncadd [#allocation5], %s1488
      %s1491 = sshll.u32 [#allocation6], 4
      %s1492 = int_to_ptr.vmem [resolvable:$true] %s1491
      %1494 = dma.vmem_to_hbm [thread:$0]  %s1492, 128, %s2, [#allocation5]
    $region29: #{tpu_custom_call.1} parent=1 // pred_fallthru
      _
    // Predicated region
    $region30: #{tpu_custom_call.1} parent=1 // pred_check
      _
    $region31: #{tpu_custom_call.1} parent=1 // pred_check_branch
      %1496 = sbr.rel (0) target = $region33
    $region32: #{tpu_custom_call.1} parent=1 // pred_region
      %1497 = dma.done [#allocation5], 128
    $region33: #{tpu_custom_call.1} parent=1 // pred_fallthru
      _
    %1498 = vsyncpa [#allocation4], 1
    %1499 = vsyncpa [#allocation5], 1

</llo_original>
